<compile_context>
chip_gen: v5e
topology: v5e:2x2
jax: 0.10.0
libtpu: 0.0.40
codegen_flags: <defaults>
</compile_context>

<pallas_src>
import jax
import jax.numpy as jnp
from jax.experimental import pallas as pl
from jax.experimental.pallas import tpu as pltpu


_LANE = 128
_SUBLANE = 8
# Below this batch size a single fused XLA HLO beats the kernel path
# (fixed per-call + per-step overhead dominate at tiny shapes).
_MIN_PALLAS_BATCH = 1024


def _base_network_kernel(x_ref, w1_ref, b1_ref, w2_ref, b2_ref, o_ref):
    # x_ref:  (TB, input_dims)       row-major, batch on sublanes
    # w1_ref: (input_dims, hidden)   b1_ref: (1, hidden)
    # w2_ref: (hidden, output_dims)  b2_ref: (1, output_dims)
    # o_ref:  (TB, output_dims)
    x = x_ref[...]
    # fc1 on the MXU with f32 accumulation; bias + ReLU in f32 on the VPU
    # (v5e has no bf16 VPU, so elementwise math stays f32 everywhere).
    h = jnp.dot(x, w1_ref[...], preferred_element_type=jnp.float32)
    h = jnp.maximum(h + b1_ref[...], 0.0)
    # Feed the second matmul in the weights' dtype (no-op for f32; a single
    # on-chip convert when bf16 weights/activations are used).
    h = h.astype(w2_ref.dtype)
    y = jnp.dot(h, w2_ref[...], preferred_element_type=jnp.float32) + b2_ref[...]
    o_ref[...] = y.astype(o_ref.dtype)


def _round_up(n, m):
    return ((n + m - 1) // m) * m


def _choose_batch_tile(B, input_dims, output_dims, x_itemsize):
    """Large, VMEM-safe batch tile giving an even grid-step count (>= 2)."""
    # Pallas double-buffers the pipelined x and out blocks; keep
    # 2 * (x_tile + out_tile) well under the smallest scoped-VMEM default
    # (16 MiB on v5e, 32 MiB on v6e/v7x): ~6 MiB per buffer set.
    bytes_per_row = input_dims * x_itemsize + output_dims * 4
    vmem_cap = ((6 * 1024 * 1024) // max(bytes_per_row, 1)) // _LANE * _LANE
    cap = max(_LANE, min(32768, vmem_cap))
    # Even number of grid steps so v7x's two TensorCores stay load-balanced.
    steps = max(2, _round_up(pl.cdiv(B, cap), 2))
    tile = _round_up(pl.cdiv(B, steps), _LANE)
    return min(tile, cap)


def base_network_forward(x, w1, b1, w2, b2, *, batch_tile=None):
    """Fused forward pass of BaseNetwork: fc2(relu(fc1(x))).

    x:  [B, input_dims] (float32, or bf16 if produced narrow upstream)
    w1: [input_dims, 32], b1: [32]
    w2: [32, output_dims], b2: [output_dims]
    returns [B, output_dims] float32
    """
    B, input_dims = x.shape
    hidden = w1.shape[1]
    output_dims = w2.shape[1]

    # ---- tiny-batch fast path (e.g. single env step): plain fused XLA ------
    if B < _MIN_PALLAS_BATCH:
        h = jnp.maximum(x.astype(jnp.float32) @ w1 + b1, 0.0)
        return (h @ w2 + b2).astype(jnp.float32)

    # Only use narrow matmul operands if the activations already arrive
    # narrow from upstream (never add a wrapper-side cast pass over x);
    # the weights are tiny and VMEM-resident, so casting them is free.
    if x.dtype != jnp.float32:
        w1 = w1.astype(x.dtype)
        w2 = w2.astype(x.dtype)

    if batch_tile is None:
        batch_tile = _choose_batch_tile(B, input_dims, output_dims, x.dtype.itemsize)
    assert batch_tile % _SUBLANE == 0, "batch_tile must be a multiple of 8 (sublanes)"

    b1_c = b1.reshape(1, hidden).astype(jnp.float32)
    b2_c = b2.reshape(1, output_dims).astype(jnp.float32)

    grid = (pl.cdiv(B, batch_tile),)   # partial last block allowed; no padding

    return pl.pallas_call(
        _base_network_kernel,
        out_shape=jax.ShapeDtypeStruct((B, output_dims), jnp.float32),
        grid_spec=pltpu.PrefetchScalarGridSpec(
            num_scalar_prefetch=0,
            grid=grid,
            in_specs=[
                # activations: row-major blocks tiled over batch (sublane axis)
                pl.BlockSpec((batch_tile, input_dims), lambda i: (i, 0)),
                # parameters: whole array, constant index map -> DMA'd once
                # and kept resident in VMEM across all grid steps
                pl.BlockSpec((input_dims, hidden), lambda i: (0, 0)),
                pl.BlockSpec((1, hidden), lambda i: (0, 0)),
                pl.BlockSpec((hidden, output_dims), lambda i: (0, 0)),
                pl.BlockSpec((1, output_dims), lambda i: (0, 0)),
            ],
            out_specs=pl.BlockSpec((batch_tile, output_dims), lambda i: (i, 0)),
        ),
        compiler_params=pltpu.CompilerParams(
            dimension_semantics=("parallel",),
        ),
    )(x, w1, b1_c, w2, b2_c)


def init_params(key, input_dims, output_dims, hidden=32):
    """Deterministic init mimicking PyTorch nn.Linear default (U[-1/sqrt(fan_in), ...])."""
    k1, k2, k3, k4 = jax.random.split(key, 4)
    bound1 = 1.0 / jnp.sqrt(jnp.float32(input_dims))
    bound2 = 1.0 / jnp.sqrt(jnp.float32(hidden))
    w1 = jax.random.uniform(k1, (input_dims, hidden), jnp.float32, -bound1, bound1)
    b1 = jax.random.uniform(k2, (hidden,), jnp.float32, -bound1, bound1)
    w2 = jax.random.uniform(k3, (hidden, output_dims), jnp.float32, -bound2, bound2)
    b2 = jax.random.uniform(k4, (output_dims,), jnp.float32, -bound2, bound2)
    return w1, b1, w2, b2


def _reference(x, w1, b1, w2, b2):
    return jnp.maximum(x @ w1 + b1, 0.0) @ w2 + b2


if __name__ == "__main__":
    key = jax.random.PRNGKey(0)
    input_dims = 16
    output_dims = 4

    k_x, k_x2, k_p = jax.random.split(key, 3)
    w1, b1, w2, b2 = init_params(k_p, input_dims, output_dims)

    # Pallas path: 2 even grid steps of 1024 rows each (both v7x cores busy).
    batch = 2048
    x = jax.random.normal(k_x, (batch, input_dims), jnp.float32)
    out = jax.block_until_ready(base_network_forward(x, w1, b1, w2, b2))
    ref = _reference(x, w1, b1, w2, b2)
    assert out.shape == (batch, output_dims)
    assert jnp.allclose(out, ref, atol=1e-4, rtol=1e-4), "pallas path mismatch"

    # Ragged batch: exercises the partial last block (no pad / slice passes).
    batch_r = 1500
    x_r = jax.random.normal(k_x2, (batch_r, input_dims), jnp.float32)
    out_r = jax.block_until_ready(base_network_forward(x_r, w1, b1, w2, b2))
    ref_r = _reference(x_r, w1, b1, w2, b2)
    assert out_r.shape == (batch_r, output_dims)
    assert jnp.allclose(out_r, ref_r, atol=1e-4, rtol=1e-4), "partial-block path mismatch"

    # Tiny-batch fast path (plain fused XLA, no kernel launch).
    x_s = x[:8]
    out_s = jax.block_until_ready(base_network_forward(x_s, w1, b1, w2, b2))
    assert jnp.allclose(out_s, ref[:8], atol=1e-4, rtol=1e-4), "fast path mismatch"

    print("KERNEL_OK")
</pallas_src>

<mosaic_0001>
module attributes {stable_mosaic.version = 11 : i64} {
  func.func @_base_network_kernel(%arg0: i32, %arg1: memref<1024x16xf32, #tpu.memory_space<vmem>>, %arg2: memref<16x32xf32, #tpu.memory_space<vmem>>, %arg3: memref<1x32xf32, #tpu.memory_space<vmem>>, %arg4: memref<32x4xf32, #tpu.memory_space<vmem>>, %arg5: memref<1x4xf32, #tpu.memory_space<vmem>>, %arg6: memref<1024x4xf32, #tpu.memory_space<vmem>>) attributes {dimension_semantics = [#tpu.dimension_semantics<parallel>], iteration_bounds = array<i64: 2>, scalar_prefetch = 0 : i64, scratch_operands = 0 : i64, tpu.core_type = #tpu.core_type<tc>, window_params = [{transform_indices = @transform_0, window_bounds = array<i64: 1024, 16>}, {pipeline_mode = #tpu.pipeline_mode<synchronous>, transform_indices = @transform_1, window_bounds = array<i64: 16, 32>}, {pipeline_mode = #tpu.pipeline_mode<synchronous>, transform_indices = @transform_2, window_bounds = array<i64: 1, 32>}, {pipeline_mode = #tpu.pipeline_mode<synchronous>, transform_indices = @transform_3, window_bounds = array<i64: 32, 4>}, {pipeline_mode = #tpu.pipeline_mode<synchronous>, transform_indices = @transform_4, window_bounds = array<i64: 1, 4>}, {transform_indices = @transform_5, window_bounds = array<i64: 1024, 4>}]} {
    %c0 = arith.constant 0 : index
    %c0_0 = arith.constant 0 : index
    %0 = vector.load %arg1[%c0, %c0_0] : memref<1024x16xf32, #tpu.memory_space<vmem>>, vector<1024x16xf32>
    %c0_1 = arith.constant 0 : index
    %c0_2 = arith.constant 0 : index
    %1 = vector.load %arg2[%c0_1, %c0_2] : memref<16x32xf32, #tpu.memory_space<vmem>>, vector<16x32xf32>
    %cst = arith.constant dense<0.000000e+00> : vector<1024x32xf32>
    %2 = tpu.matmul %0, %1, %cst {dimension_numbers = #tpu.dot_dimension_numbers<[1], [0], [0], [1], [0, 0, 1, 1], [], []>} : vector<1024x16xf32>, vector<16x32xf32>, vector<1024x32xf32> -> vector<1024x32xf32>
    %c0_3 = arith.constant 0 : index
    %c0_4 = arith.constant 0 : index
    %3 = vector.load %arg3[%c0_3, %c0_4] : memref<1x32xf32, #tpu.memory_space<vmem>>, vector<1x32xf32>
    %4 = vector.broadcast %3 : vector<1x32xf32> to vector<1024x32xf32>
    %5 = arith.addf %2, %4 : vector<1024x32xf32>
    %cst_5 = arith.constant 0.000000e+00 : f32
    %6 = vector.broadcast %cst_5 : f32 to vector<1024x32xf32>
    %7 = arith.maximumf %5, %6 : vector<1024x32xf32>
    %c0_6 = arith.constant 0 : index
    %c0_7 = arith.constant 0 : index
    %8 = vector.load %arg4[%c0_6, %c0_7] : memref<32x4xf32, #tpu.memory_space<vmem>>, vector<32x4xf32>
    %cst_8 = arith.constant dense<0.000000e+00> : vector<1024x4xf32>
    %9 = tpu.matmul %7, %8, %cst_8 {dimension_numbers = #tpu.dot_dimension_numbers<[1], [0], [0], [1], [0, 0, 1, 1], [], []>} : vector<1024x32xf32>, vector<32x4xf32>, vector<1024x4xf32> -> vector<1024x4xf32>
    %c0_9 = arith.constant 0 : index
    %c0_10 = arith.constant 0 : index
    %10 = vector.load %arg5[%c0_9, %c0_10] : memref<1x4xf32, #tpu.memory_space<vmem>>, vector<1x4xf32>
    %11 = vector.broadcast %10 : vector<1x4xf32> to vector<1024x4xf32>
    %12 = arith.addf %9, %11 : vector<1024x4xf32>
    %c0_11 = arith.constant 0 : index
    %c0_12 = arith.constant 0 : index
    %13 = vector.load %arg6[%c0_11, %c0_12] : memref<1024x4xf32, #tpu.memory_space<vmem>>, vector<1024x4xf32>
    tpu.vector_store %arg6[%c0_11, %c0_12], %12 {strides = array<i32>} : memref<1024x4xf32, #tpu.memory_space<vmem>>, vector<1024x4xf32>,
    return
  }
  func.func @transform_0(%arg0: i32) -> (i32, i32) {
    %c0_i32 = arith.constant 0 : i32
    %c0_i32_0 = arith.constant 0 : i32
    return %arg0, %c0_i32 : i32, i32
  }
  func.func @transform_1(%arg0: i32) -> (i32, i32) {
    %c0_i32 = arith.constant 0 : i32
    %c0_i32_0 = arith.constant 0 : i32
    %c0_i32_1 = arith.constant 0 : i32
    return %c0_i32, %c0_i32_0 : i32, i32
  }
  func.func @transform_2(%arg0: i32) -> (i32, i32) {
    %c0_i32 = arith.constant 0 : i32
    %c0_i32_0 = arith.constant 0 : i32
    %c0_i32_1 = arith.constant 0 : i32
    return %c0_i32, %c0_i32_0 : i32, i32
  }
  func.func @transform_3(%arg0: i32) -> (i32, i32) {
    %c0_i32 = arith.constant 0 : i32
    %c0_i32_0 = arith.constant 0 : i32
    %c0_i32_1 = arith.constant 0 : i32
    return %c0_i32, %c0_i32_0 : i32, i32
  }
  func.func @transform_4(%arg0: i32) -> (i32, i32) {
    %c0_i32 = arith.constant 0 : i32
    %c0_i32_0 = arith.constant 0 : i32
    %c0_i32_1 = arith.constant 0 : i32
    return %c0_i32, %c0_i32_0 : i32, i32
  }
  func.func @transform_5(%arg0: i32) -> (i32, i32) {
    %c0_i32 = arith.constant 0 : i32
    %c0_i32_0 = arith.constant 0 : i32
    return %arg0, %c0_i32 : i32, i32
  }
}

</mosaic_0001>

<llo_original>
// kernel: tpu_custom_call.1
$region0: #{tpu_custom_call.1}
  #allocation0 [shape = 'u32[]', space=smem, size = 0x4, offset = 0x4, fixed_abs, tag = 'smem constant byte address 0x4 - core index']
  #allocation1 [shape = 'u32[72,128]{1,0:T(1,128)}', space=vmem, size = 0x9000, scoped, tag = 'internal scratch']
  %s0 = inlined_call_operand.vmem [shape: f32[2048,16], index: 0, kind: input, shape index: {}]
  %s1 = inlined_call_operand.vmem [shape: f32[16,32], index: 1, kind: input, shape index: {}]
  %s2 = inlined_call_operand.vmem [shape: f32[1,32], index: 2, kind: input, shape index: {}]
  %s3 = inlined_call_operand.vmem [shape: f32[32,4], index: 3, kind: input, shape index: {}]
  %s4 = inlined_call_operand.vmem [shape: f32[1,4], index: 4, kind: input, shape index: {}]
  %s5 = inlined_call_operand.vmem [shape: f32[2048,4], index: 5, kind: output, shape index: {}]
  %s6 = sld [smem:[#allocation0]]
  $region53: #{tpu_custom_call.1} parent=0
    _
  %s8 = ssub.s32 1, %s6
  %s9 = scalar_select 0, %s8, %s6
  loop: start=0, step=1, limit=4
  $region2: #{tpu_custom_call.1} parent=0 // loop_pre_header
    _
  $region3: #{tpu_custom_call.1} parent=0 // loop_header
    %s11 = sphi 0, %s15
    %p12 = scmp.ge.s32.totalorder %s11, 4
    %s21 = sphi 0, %s23
    %s24 = sphi 0, %s21
    %s25 = sphi 0, %s24
    %s41 = sphi 0, %s25
    %s45 = sphi 0, %s45
    %s47 = sphi 0, %s45
    %s48 = sphi 0, %s47
    %s62 = sphi 0, %s48
    %s66 = sphi 0, %s66
    %s68 = sphi 0, %s66
    %s69 = sphi 0, %s68
    %s83 = sphi 0, %s69
    %s87 = sphi 0, %s87
    %s89 = sphi 0, %s87
    %s90 = sphi 0, %s89
    %s104 = sphi 0, %s90
    %s108 = sphi 0, %s108
    %s110 = sphi 0, %s108
    %s111 = sphi 0, %s110
    %s125 = sphi 0, %s111
    %s131 = sphi 0, %s133
    %s134 = sphi 0, %s131
    %s135 = sphi 0, %s134
    %s151 = sphi 0, %s135
  $region4: #{tpu_custom_call.1} parent=0 // loop_header_branch
    %14 = sbr.rel (%p12) target = $region8
  $region5: #{tpu_custom_call.1} parent=0 // loop_body
    %s16 = ssub.s32 %s11, 1
    %s17 = ssub.s32 %s11, 2
    %s18 = sadd.s32 %s11, 1
    %s19 = ssub.s32 %s11, %s18
    %p20 = scmp.eq.s32.totalorder %s19, 0
    %s22 = sadd.s32 %s21, 1
    %s23 = scalar_select %p20, %s21, %s22
    %p26 = pneg %p20
    %p27 = scmp.eq.s32.totalorder %s11, 1
    %p28 = por %p26, %p27
    %p29 = scmp.ne.s32.totalorder %s21, %s24
    %p30 = scmp.eq.s32.totalorder %s11, 0
    %p31 = por %p29, %p30
    %p32 = scmp.ne.s32.totalorder %s21, %s24
    %p33 = scmp.eq.s32.totalorder %s16, 1
    %p34 = por %p32, %p33
    %p35 = scmp.ne.s32.totalorder %s24, %s25
    %p36 = scmp.eq.s32.totalorder %s16, 0
    %p37 = por %p35, %p36
    %p38 = scmp.ne.s32.totalorder %s24, %s25
    %p39 = scmp.eq.s32.totalorder %s17, 1
    %p40 = por %p38, %p39
    %p42 = scmp.ne.s32.totalorder %s25, %s41
    %p43 = scmp.eq.s32.totalorder %s17, 0
    %p44 = por %p42, %p43
    %s46 = sadd.s32 %s45, 1
    %p49 = scmp.eq.s32.totalorder %s11, 1
    %p50 = scmp.ne.s32.totalorder %s45, %s47
    %p51 = scmp.eq.s32.totalorder %s11, 0
    %p52 = por %p50, %p51
    %p53 = scmp.ne.s32.totalorder %s45, %s47
    %p54 = scmp.eq.s32.totalorder %s16, 1
    %p55 = por %p53, %p54
    %p56 = scmp.ne.s32.totalorder %s47, %s48
    %p57 = scmp.eq.s32.totalorder %s16, 0
    %p58 = por %p56, %p57
    %p59 = scmp.ne.s32.totalorder %s47, %s48
    %p60 = scmp.eq.s32.totalorder %s17, 1
    %p61 = por %p59, %p60
    %p63 = scmp.ne.s32.totalorder %s48, %s62
    %p64 = scmp.eq.s32.totalorder %s17, 0
    %p65 = por %p63, %p64
    %s67 = sadd.s32 %s66, 1
    %p70 = scmp.eq.s32.totalorder %s11, 1
    %p71 = scmp.ne.s32.totalorder %s66, %s68
    %p72 = scmp.eq.s32.totalorder %s11, 0
    %p73 = por %p71, %p72
    %p74 = scmp.ne.s32.totalorder %s66, %s68
    %p75 = scmp.eq.s32.totalorder %s16, 1
    %p76 = por %p74, %p75
    %p77 = scmp.ne.s32.totalorder %s68, %s69
    %p78 = scmp.eq.s32.totalorder %s16, 0
    %p79 = por %p77, %p78
    %p80 = scmp.ne.s32.totalorder %s68, %s69
    %p81 = scmp.eq.s32.totalorder %s17, 1
    %p82 = por %p80, %p81
    %p84 = scmp.ne.s32.totalorder %s69, %s83
    %p85 = scmp.eq.s32.totalorder %s17, 0
    %p86 = por %p84, %p85
    %s88 = sadd.s32 %s87, 1
    %p91 = scmp.eq.s32.totalorder %s11, 1
    %p92 = scmp.ne.s32.totalorder %s87, %s89
    %p93 = scmp.eq.s32.totalorder %s11, 0
    %p94 = por %p92, %p93
    %p95 = scmp.ne.s32.totalorder %s87, %s89
    %p96 = scmp.eq.s32.totalorder %s16, 1
    %p97 = por %p95, %p96
    %p98 = scmp.ne.s32.totalorder %s89, %s90
    %p99 = scmp.eq.s32.totalorder %s16, 0
    %p100 = por %p98, %p99
    %p101 = scmp.ne.s32.totalorder %s89, %s90
    %p102 = scmp.eq.s32.totalorder %s17, 1
    %p103 = por %p101, %p102
    %p105 = scmp.ne.s32.totalorder %s90, %s104
    %p106 = scmp.eq.s32.totalorder %s17, 0
    %p107 = por %p105, %p106
    %s109 = sadd.s32 %s108, 1
    %p112 = scmp.eq.s32.totalorder %s11, 1
    %p113 = scmp.ne.s32.totalorder %s108, %s110
    %p114 = scmp.eq.s32.totalorder %s11, 0
    %p115 = por %p113, %p114
    %p116 = scmp.ne.s32.totalorder %s108, %s110
    %p117 = scmp.eq.s32.totalorder %s16, 1
    %p118 = por %p116, %p117
    %p119 = scmp.ne.s32.totalorder %s110, %s111
    %p120 = scmp.eq.s32.totalorder %s16, 0
    %p121 = por %p119, %p120
    %p122 = scmp.ne.s32.totalorder %s110, %s111
    %p123 = scmp.eq.s32.totalorder %s17, 1
    %p124 = por %p122, %p123
    %p126 = scmp.ne.s32.totalorder %s111, %s125
    %p127 = scmp.eq.s32.totalorder %s17, 0
    %p128 = por %p126, %p127
    %s129 = ssub.s32 %s11, %s18
    %p130 = scmp.eq.s32.totalorder %s129, 0
    %s132 = sadd.s32 %s131, 1
    %s133 = scalar_select %p130, %s131, %s132
    %p136 = pneg %p130
    %p137 = scmp.eq.s32.totalorder %s11, 1
    %p138 = por %p136, %p137
    %p139 = scmp.ne.s32.totalorder %s131, %s134
    %p140 = scmp.eq.s32.totalorder %s11, 0
    %p141 = por %p139, %p140
    %p142 = scmp.ne.s32.totalorder %s131, %s134
    %p143 = scmp.eq.s32.totalorder %s16, 1
    %p144 = por %p142, %p143
    %p145 = scmp.ne.s32.totalorder %s134, %s135
    %p146 = scmp.eq.s32.totalorder %s16, 0
    %p147 = por %p145, %p146
    %p148 = scmp.ne.s32.totalorder %s134, %s135
    %p149 = scmp.eq.s32.totalorder %s17, 1
    %p150 = por %p148, %p149
    %p152 = scmp.ne.s32.totalorder %s135, %s151
    %p153 = scmp.eq.s32.totalorder %s17, 0
    %p154 = por %p152, %p153
    %p155 = scmp.le.s32.totalorder 1, %s11
    %p156 = scmp.lt.s32.totalorder %s11, 3
    %p157 = pnand %p155, %p156
    %p158 = pneg %p157
    // Predicated region
    $region9: #{tpu_custom_call.1} parent=5 // pred_check
      _
    $region10: #{tpu_custom_call.1} parent=5 // pred_check_branch
      %160 = sbr.rel (%p157) target = $region12
    $region11: #{tpu_custom_call.1} parent=5 // pred_region
      %s161 = ssub.s32 %s11, 1
      // Predicated region
      $region13: #{tpu_custom_call.1} parent=11 // pred_check
        %p162 = pneg %p58
      $region14: #{tpu_custom_call.1} parent=11 // pred_check_branch
        %164 = sbr.rel (%p162) target = $region16
      $region15: #{tpu_custom_call.1} parent=11 // pred_region
        _
      $region16: #{tpu_custom_call.1} parent=11 // pred_fallthru
        _
      // Predicated region
      $region17: #{tpu_custom_call.1} parent=11 // pred_check
        %p165 = pneg %p79
      $region18: #{tpu_custom_call.1} parent=11 // pred_check_branch
        %167 = sbr.rel (%p165) target = $region20
      $region19: #{tpu_custom_call.1} parent=11 // pred_region
        _
      $region20: #{tpu_custom_call.1} parent=11 // pred_fallthru
        _
      // Predicated region
      $region21: #{tpu_custom_call.1} parent=11 // pred_check
        %p168 = pneg %p100
      $region22: #{tpu_custom_call.1} parent=11 // pred_check_branch
        %170 = sbr.rel (%p168) target = $region24
      $region23: #{tpu_custom_call.1} parent=11 // pred_region
        _
      $region24: #{tpu_custom_call.1} parent=11 // pred_fallthru
        _
      // Predicated region
      $region25: #{tpu_custom_call.1} parent=11 // pred_check
        %p171 = pneg %p121
      $region26: #{tpu_custom_call.1} parent=11 // pred_check_branch
        %173 = sbr.rel (%p171) target = $region28
      $region27: #{tpu_custom_call.1} parent=11 // pred_region
        _
      $region28: #{tpu_custom_call.1} parent=11 // pred_fallthru
        _
    $region12: #{tpu_custom_call.1} parent=5 // pred_fallthru
      _
    %p174 = scmp.lt.s32.totalorder %s11, 2
    // Predicated region
    $region29: #{tpu_custom_call.1} parent=5 // pred_check
      %p175 = pneg %p174
    $region30: #{tpu_custom_call.1} parent=5 // pred_check_branch
      %177 = sbr.rel (%p175) target = $region32
    $region31: #{tpu_custom_call.1} parent=5 // pred_region
      // Predicated region
      $region33: #{tpu_custom_call.1} parent=31 // pred_check
        %p178 = pneg %p31
      $region34: #{tpu_custom_call.1} parent=31 // pred_check_branch
        %180 = sbr.rel (%p178) target = $region36
      $region35: #{tpu_custom_call.1} parent=31 // pred_region
        %s181 = smul.u32 128, %s11
        %p182 = scmp.lt.s32.totalorder %s181, 255
        %s183 = scalar_select %p182, %s181, 255
        %s184 = smul.addr %s183, 8
        %s185 = scalar_lea.vmem %s0, %s184
        %s186 = smul.u32 128, %s11
      $region36: #{tpu_custom_call.1} parent=31 // pred_fallthru
        _
    $region32: #{tpu_custom_call.1} parent=5 // pred_fallthru
      _
    %p187 = scmp.le.s32.totalorder 1, %s11
    %p188 = scmp.lt.s32.totalorder %s11, 3
    %p189 = pnand %p187, %p188
    %p190 = pneg %p189
    // Predicated region
    $region37: #{tpu_custom_call.1} parent=5 // pred_check
      _
    $region38: #{tpu_custom_call.1} parent=5 // pred_check_branch
      %192 = sbr.rel (%p189) target = $region40
    $region39: #{tpu_custom_call.1} parent=5 // pred_region
      %s193 = ssub.s32 %s11, 1
      %s194 = smul.u32 128, %s16
      %p195 = scmp.lt.s32.totalorder %s194, 255
      %s196 = scalar_select %p195, %s194, 255
      %s197 = smul.addr %s196, 8
      %s198 = scalar_lea.vmem %s0, %s197
      %p199 = pneg %p37
      %p200 = pneg %p34
      %p201 = pneg %p58
      %p202 = pneg %p55
      %p203 = pneg %p79
      %p204 = pneg %p76
      %p205 = pneg %p100
      %p206 = pneg %p97
      %p207 = pneg %p121
      %p208 = pneg %p118
      %p209 = pneg %p147
      %p210 = pneg %p144
      %s211 = smul.u32 128, %s16
      %p212 = scmp.lt.s32.totalorder %s211, 255
      %s213 = scalar_select %p212, %s211, 255
      %s214 = smul.addr %s213, 8
      %s215 = scalar_lea.vmem %s5, %s214
      %s216 = smul.u32 128, %s16
      %p217 = scmp.lt.s32.totalorder %s216, 255
      %s218 = scalar_select %p217, %s216, 255
      %s219 = smul.addr %s218, 8
      %s220 = scalar_lea.vmem %s0, %s219
      %s221 = smul.u32 128, %s16
      %s222 = smul.u32 128, %s16
      %p223 = scmp.lt.s32.totalorder %s222, 255
      %s224 = scalar_select %p223, %s222, 255
      %s225 = smul.addr %s224, 8
      %s226 = scalar_lea.vmem %s5, %s225
      %s227 = smul.u32 128, %s16
      %v228 = vld [vmem:[%s220] sm:$0xff]
      %v229 = vld [vmem:[%s220 + $0x8] sm:$0xff]
      %v230 = vld [vmem:[%s220 + $0x10] sm:$0xff]
      %v231 = vld [vmem:[%s220 + $0x18] sm:$0xff]
      %v232 = vld [vmem:[%s220 + $0x20] sm:$0xff]
      %v233 = vld [vmem:[%s220 + $0x28] sm:$0xff]
      %v234 = vld [vmem:[%s220 + $0x30] sm:$0xff]
      %v235 = vld [vmem:[%s220 + $0x38] sm:$0xff]
      %v236 = vld [vmem:[%s220 + $0x40] sm:$0xff]
      %v237 = vld [vmem:[%s220 + $0x48] sm:$0xff]
      %v238 = vld [vmem:[%s220 + $0x50] sm:$0xff]
      %v239 = vld [vmem:[%s220 + $0x58] sm:$0xff]
      %v240 = vld [vmem:[%s220 + $0x60] sm:$0xff]
      %v241 = vld [vmem:[%s220 + $0x68] sm:$0xff]
      %v242 = vld [vmem:[%s220 + $0x70] sm:$0xff]
      %v243 = vld [vmem:[%s220 + $0x78] sm:$0xff]
      %v244 = vld [vmem:[%s220 + $0x80] sm:$0xff]
      %v245 = vld [vmem:[%s220 + $0x88] sm:$0xff]
      %v246 = vld [vmem:[%s220 + $0x90] sm:$0xff]
      %v247 = vld [vmem:[%s220 + $0x98] sm:$0xff]
      %v248 = vld [vmem:[%s220 + $0xa0] sm:$0xff]
      %v249 = vld [vmem:[%s220 + $0xa8] sm:$0xff]
      %v250 = vld [vmem:[%s220 + $0xb0] sm:$0xff]
      %v251 = vld [vmem:[%s220 + $0xb8] sm:$0xff]
      %v252 = vld [vmem:[%s220 + $0xc0] sm:$0xff]
      %v253 = vld [vmem:[%s220 + $0xc8] sm:$0xff]
      %v254 = vld [vmem:[%s220 + $0xd0] sm:$0xff]
      %v255 = vld [vmem:[%s220 + $0xd8] sm:$0xff]
      %v256 = vld [vmem:[%s220 + $0xe0] sm:$0xff]
      %v257 = vld [vmem:[%s220 + $0xe8] sm:$0xff]
      %v258 = vld [vmem:[%s220 + $0xf0] sm:$0xff]
      %v259 = vld [vmem:[%s220 + $0xf8] sm:$0xff]
      %v260 = vld [vmem:[%s220 + $0x100] sm:$0xff]
      %v261 = vld [vmem:[%s220 + $0x108] sm:$0xff]
      %v262 = vld [vmem:[%s220 + $0x110] sm:$0xff]
      %v263 = vld [vmem:[%s220 + $0x118] sm:$0xff]
      %v264 = vld [vmem:[%s220 + $0x120] sm:$0xff]
      %v265 = vld [vmem:[%s220 + $0x128] sm:$0xff]
      %v266 = vld [vmem:[%s220 + $0x130] sm:$0xff]
      %v267 = vld [vmem:[%s220 + $0x138] sm:$0xff]
      %v268 = vld [vmem:[%s220 + $0x140] sm:$0xff]
      %v269 = vld [vmem:[%s220 + $0x148] sm:$0xff]
      %v270 = vld [vmem:[%s220 + $0x150] sm:$0xff]
      %v271 = vld [vmem:[%s220 + $0x158] sm:$0xff]
      %v272 = vld [vmem:[%s220 + $0x160] sm:$0xff]
      %v273 = vld [vmem:[%s220 + $0x168] sm:$0xff]
      %v274 = vld [vmem:[%s220 + $0x170] sm:$0xff]
      %v275 = vld [vmem:[%s220 + $0x178] sm:$0xff]
      %v276 = vld [vmem:[%s220 + $0x180] sm:$0xff]
      %v277 = vld [vmem:[%s220 + $0x188] sm:$0xff]
      %v278 = vld [vmem:[%s220 + $0x190] sm:$0xff]
      %v279 = vld [vmem:[%s220 + $0x198] sm:$0xff]
      %v280 = vld [vmem:[%s220 + $0x1a0] sm:$0xff]
      %v281 = vld [vmem:[%s220 + $0x1a8] sm:$0xff]
      %v282 = vld [vmem:[%s220 + $0x1b0] sm:$0xff]
      %v283 = vld [vmem:[%s220 + $0x1b8] sm:$0xff]
      %v284 = vld [vmem:[%s220 + $0x1c0] sm:$0xff]
      %v285 = vld [vmem:[%s220 + $0x1c8] sm:$0xff]
      %v286 = vld [vmem:[%s220 + $0x1d0] sm:$0xff]
      %v287 = vld [vmem:[%s220 + $0x1d8] sm:$0xff]
      %v288 = vld [vmem:[%s220 + $0x1e0] sm:$0xff]
      %v289 = vld [vmem:[%s220 + $0x1e8] sm:$0xff]
      %v290 = vld [vmem:[%s220 + $0x1f0] sm:$0xff]
      %v291 = vld [vmem:[%s220 + $0x1f8] sm:$0xff]
      %v292 = vld [vmem:[%s220 + $0x200] sm:$0xff]
      %v293 = vld [vmem:[%s220 + $0x208] sm:$0xff]
      %v294 = vld [vmem:[%s220 + $0x210] sm:$0xff]
      %v295 = vld [vmem:[%s220 + $0x218] sm:$0xff]
      %v296 = vld [vmem:[%s220 + $0x220] sm:$0xff]
      %v297 = vld [vmem:[%s220 + $0x228] sm:$0xff]
      %v298 = vld [vmem:[%s220 + $0x230] sm:$0xff]
      %v299 = vld [vmem:[%s220 + $0x238] sm:$0xff]
      %v300 = vld [vmem:[%s220 + $0x240] sm:$0xff]
      %v301 = vld [vmem:[%s220 + $0x248] sm:$0xff]
      %v302 = vld [vmem:[%s220 + $0x250] sm:$0xff]
      %v303 = vld [vmem:[%s220 + $0x258] sm:$0xff]
      %v304 = vld [vmem:[%s220 + $0x260] sm:$0xff]
      %v305 = vld [vmem:[%s220 + $0x268] sm:$0xff]
      %v306 = vld [vmem:[%s220 + $0x270] sm:$0xff]
      %v307 = vld [vmem:[%s220 + $0x278] sm:$0xff]
      %v308 = vld [vmem:[%s220 + $0x280] sm:$0xff]
      %v309 = vld [vmem:[%s220 + $0x288] sm:$0xff]
      %v310 = vld [vmem:[%s220 + $0x290] sm:$0xff]
      %v311 = vld [vmem:[%s220 + $0x298] sm:$0xff]
      %v312 = vld [vmem:[%s220 + $0x2a0] sm:$0xff]
      %v313 = vld [vmem:[%s220 + $0x2a8] sm:$0xff]
      %v314 = vld [vmem:[%s220 + $0x2b0] sm:$0xff]
      %v315 = vld [vmem:[%s220 + $0x2b8] sm:$0xff]
      %v316 = vld [vmem:[%s220 + $0x2c0] sm:$0xff]
      %v317 = vld [vmem:[%s220 + $0x2c8] sm:$0xff]
      %v318 = vld [vmem:[%s220 + $0x2d0] sm:$0xff]
      %v319 = vld [vmem:[%s220 + $0x2d8] sm:$0xff]
      %v320 = vld [vmem:[%s220 + $0x2e0] sm:$0xff]
      %v321 = vld [vmem:[%s220 + $0x2e8] sm:$0xff]
      %v322 = vld [vmem:[%s220 + $0x2f0] sm:$0xff]
      %v323 = vld [vmem:[%s220 + $0x2f8] sm:$0xff]
      %v324 = vld [vmem:[%s220 + $0x300] sm:$0xff]
      %v325 = vld [vmem:[%s220 + $0x308] sm:$0xff]
      %v326 = vld [vmem:[%s220 + $0x310] sm:$0xff]
      %v327 = vld [vmem:[%s220 + $0x318] sm:$0xff]
      %v328 = vld [vmem:[%s220 + $0x320] sm:$0xff]
      %v329 = vld [vmem:[%s220 + $0x328] sm:$0xff]
      %v330 = vld [vmem:[%s220 + $0x330] sm:$0xff]
      %v331 = vld [vmem:[%s220 + $0x338] sm:$0xff]
      %v332 = vld [vmem:[%s220 + $0x340] sm:$0xff]
      %v333 = vld [vmem:[%s220 + $0x348] sm:$0xff]
      %v334 = vld [vmem:[%s220 + $0x350] sm:$0xff]
      %v335 = vld [vmem:[%s220 + $0x358] sm:$0xff]
      %v336 = vld [vmem:[%s220 + $0x360] sm:$0xff]
      %v337 = vld [vmem:[%s220 + $0x368] sm:$0xff]
      %v338 = vld [vmem:[%s220 + $0x370] sm:$0xff]
      %v339 = vld [vmem:[%s220 + $0x378] sm:$0xff]
      %v340 = vld [vmem:[%s220 + $0x380] sm:$0xff]
      %v341 = vld [vmem:[%s220 + $0x388] sm:$0xff]
      %v342 = vld [vmem:[%s220 + $0x390] sm:$0xff]
      %v343 = vld [vmem:[%s220 + $0x398] sm:$0xff]
      %v344 = vld [vmem:[%s220 + $0x3a0] sm:$0xff]
      %v345 = vld [vmem:[%s220 + $0x3a8] sm:$0xff]
      %v346 = vld [vmem:[%s220 + $0x3b0] sm:$0xff]
      %v347 = vld [vmem:[%s220 + $0x3b8] sm:$0xff]
      %v348 = vld [vmem:[%s220 + $0x3c0] sm:$0xff]
      %v349 = vld [vmem:[%s220 + $0x3c8] sm:$0xff]
      %v350 = vld [vmem:[%s220 + $0x3d0] sm:$0xff]
      %v351 = vld [vmem:[%s220 + $0x3d8] sm:$0xff]
      %v352 = vld [vmem:[%s220 + $0x3e0] sm:$0xff]
      %v353 = vld [vmem:[%s220 + $0x3e8] sm:$0xff]
      %v354 = vld [vmem:[%s220 + $0x3f0] sm:$0xff]
      %v355 = vld [vmem:[%s220 + $0x3f8] sm:$0xff]
      %v356 = vld [vmem:[%s1] sm:$0xff]
      %v357 = vld [vmem:[%s1 + $0x8] sm:$0xff]
      %v358 = vld [vmem:[%s2] sm:$0x1]
      %v360 = vperm.slane %v358, 0
      %vm362 = vcmask 130048
      %v364 = vsel %vm362, %v228, 0
      %v367 = vsel %vm362, %v229, 0
      %v370 = vsel %vm362, %v230, 0
      %v373 = vsel %vm362, %v231, 0
      %v376 = vsel %vm362, %v232, 0
      %v379 = vsel %vm362, %v233, 0
      %v382 = vsel %vm362, %v234, 0
      %v385 = vsel %vm362, %v235, 0
      %v388 = vsel %vm362, %v236, 0
      %v391 = vsel %vm362, %v237, 0
      %v394 = vsel %vm362, %v238, 0
      %v397 = vsel %vm362, %v239, 0
      %v400 = vsel %vm362, %v240, 0
      %v403 = vsel %vm362, %v241, 0
      %v406 = vsel %vm362, %v242, 0
      %v409 = vsel %vm362, %v243, 0
      %v412 = vsel %vm362, %v244, 0
      %v415 = vsel %vm362, %v245, 0
      %v418 = vsel %vm362, %v246, 0
      %v421 = vsel %vm362, %v247, 0
      %v424 = vsel %vm362, %v248, 0
      %v427 = vsel %vm362, %v249, 0
      %v430 = vsel %vm362, %v250, 0
      %v433 = vsel %vm362, %v251, 0
      %v436 = vsel %vm362, %v252, 0
      %v439 = vsel %vm362, %v253, 0
      %v442 = vsel %vm362, %v254, 0
      %v445 = vsel %vm362, %v255, 0
      %v448 = vsel %vm362, %v256, 0
      %v451 = vsel %vm362, %v257, 0
      %v454 = vsel %vm362, %v258, 0
      %v457 = vsel %vm362, %v259, 0
      %v460 = vsel %vm362, %v260, 0
      %v463 = vsel %vm362, %v261, 0
      %v466 = vsel %vm362, %v262, 0
      %v469 = vsel %vm362, %v263, 0
      %v472 = vsel %vm362, %v264, 0
      %v475 = vsel %vm362, %v265, 0
      %v478 = vsel %vm362, %v266, 0
      %v481 = vsel %vm362, %v267, 0
      %v484 = vsel %vm362, %v268, 0
      %v487 = vsel %vm362, %v269, 0
      %v490 = vsel %vm362, %v270, 0
      %v493 = vsel %vm362, %v271, 0
      %v496 = vsel %vm362, %v272, 0
      %v499 = vsel %vm362, %v273, 0
      %v502 = vsel %vm362, %v274, 0
      %v505 = vsel %vm362, %v275, 0
      %v508 = vsel %vm362, %v276, 0
      %v511 = vsel %vm362, %v277, 0
      %v514 = vsel %vm362, %v278, 0
      %v517 = vsel %vm362, %v279, 0
      %v520 = vsel %vm362, %v280, 0
      %v523 = vsel %vm362, %v281, 0
      %v526 = vsel %vm362, %v282, 0
      %v529 = vsel %vm362, %v283, 0
      %v532 = vsel %vm362, %v284, 0
      %v535 = vsel %vm362, %v285, 0
      %v538 = vsel %vm362, %v286, 0
      %v541 = vsel %vm362, %v287, 0
      %v544 = vsel %vm362, %v288, 0
      %v547 = vsel %vm362, %v289, 0
      %v550 = vsel %vm362, %v290, 0
      %v553 = vsel %vm362, %v291, 0
      %v556 = vsel %vm362, %v292, 0
      %v559 = vsel %vm362, %v293, 0
      %v562 = vsel %vm362, %v294, 0
      %v565 = vsel %vm362, %v295, 0
      %v568 = vsel %vm362, %v296, 0
      %v571 = vsel %vm362, %v297, 0
      %v574 = vsel %vm362, %v298, 0
      %v577 = vsel %vm362, %v299, 0
      %v580 = vsel %vm362, %v300, 0
      %v583 = vsel %vm362, %v301, 0
      %v586 = vsel %vm362, %v302, 0
      %v589 = vsel %vm362, %v303, 0
      %v592 = vsel %vm362, %v304, 0
      %v595 = vsel %vm362, %v305, 0
      %v598 = vsel %vm362, %v306, 0
      %v601 = vsel %vm362, %v307, 0
      %v604 = vsel %vm362, %v308, 0
      %v607 = vsel %vm362, %v309, 0
      %v610 = vsel %vm362, %v310, 0
      %v613 = vsel %vm362, %v311, 0
      %v616 = vsel %vm362, %v312, 0
      %v619 = vsel %vm362, %v313, 0
      %v622 = vsel %vm362, %v314, 0
      %v625 = vsel %vm362, %v315, 0
      %v628 = vsel %vm362, %v316, 0
      %v631 = vsel %vm362, %v317, 0
      %v634 = vsel %vm362, %v318, 0
      %v637 = vsel %vm362, %v319, 0
      %v640 = vsel %vm362, %v320, 0
      %v643 = vsel %vm362, %v321, 0
      %v646 = vsel %vm362, %v322, 0
      %v649 = vsel %vm362, %v323, 0
      %v652 = vsel %vm362, %v324, 0
      %v655 = vsel %vm362, %v325, 0
      %v658 = vsel %vm362, %v326, 0
      %v661 = vsel %vm362, %v327, 0
      %v664 = vsel %vm362, %v328, 0
      %v667 = vsel %vm362, %v329, 0
      %v670 = vsel %vm362, %v330, 0
      %v673 = vsel %vm362, %v331, 0
      %v676 = vsel %vm362, %v332, 0
      %v679 = vsel %vm362, %v333, 0
      %v682 = vsel %vm362, %v334, 0
      %v685 = vsel %vm362, %v335, 0
      %v688 = vsel %vm362, %v336, 0
      %v691 = vsel %vm362, %v337, 0
      %v694 = vsel %vm362, %v338, 0
      %v697 = vsel %vm362, %v339, 0
      %v700 = vsel %vm362, %v340, 0
      %v703 = vsel %vm362, %v341, 0
      %v706 = vsel %vm362, %v342, 0
      %v709 = vsel %vm362, %v343, 0
      %v712 = vsel %vm362, %v344, 0
      %v715 = vsel %vm362, %v345, 0
      %v718 = vsel %vm362, %v346, 0
      %v721 = vsel %vm362, %v347, 0
      %v724 = vsel %vm362, %v348, 0
      %v727 = vsel %vm362, %v349, 0
      %v730 = vsel %vm362, %v350, 0
      %v733 = vsel %vm362, %v351, 0
      %v736 = vsel %vm362, %v352, 0
      %v739 = vsel %vm362, %v353, 0
      %v742 = vsel %vm362, %v354, 0
      %v745 = vsel %vm362, %v355, 0
      %747 = vmatpush.msra.mxu0 0.0
      %748 = vmatpush.msra.mxu0 0.0
      %749 = vmatpush.msra.mxu0 0.0
      %750 = vmatpush.msra.mxu0 0.0
      %751 = vmatpush.msra.mxu0 0.0
      %752 = vmatpush.msra.mxu0 0.0
      %753 = vmatpush.msra.mxu0 0.0
      %754 = vmatpush.msra.mxu0 0.0
      %755 = vmatpush.msra.mxu0 0.0
      %756 = vmatpush.msra.mxu0 0.0
      %757 = vmatpush.msra.mxu0 0.0
      %758 = vmatpush.msra.mxu0 0.0
      %759 = vmatpush.msra.mxu0 0.0
      %760 = vmatpush.msra.mxu0 0.0
      %761 = vmatpush.msra.mxu0 %v357
      %762 = vmatpush.msra.mxu0 %v356
      %763 = vmatmul.f32.gmra.mxu0 %v364
      %v764 = vpop.f32.mrf.mxu0
      %v765 = vadd.f32 %v360, %v764
      %766 = vmatmul.f32.gmra.mxu0 %v367
      %v767 = vpop.f32.mrf.mxu0
      %v768 = vadd.f32 %v360, %v767
      %769 = vmatmul.f32.gmra.mxu0 %v370
      %v770 = vpop.f32.mrf.mxu0
      %v771 = vadd.f32 %v360, %v770
      %772 = vmatmul.f32.gmra.mxu0 %v373
      %v773 = vpop.f32.mrf.mxu0
      %v774 = vadd.f32 %v360, %v773
      %775 = vmatmul.f32.gmra.mxu0 %v376
      %v776 = vpop.f32.mrf.mxu0
      %v777 = vadd.f32 %v360, %v776
      %778 = vmatmul.f32.gmra.mxu0 %v379
      %v779 = vpop.f32.mrf.mxu0
      %v780 = vadd.f32 %v360, %v779
      %781 = vmatmul.f32.gmra.mxu0 %v382
      %v782 = vpop.f32.mrf.mxu0
      %v783 = vadd.f32 %v360, %v782
      %784 = vmatmul.f32.gmra.mxu0 %v385
      %v785 = vpop.f32.mrf.mxu0
      %v786 = vadd.f32 %v360, %v785
      %787 = vmatmul.f32.gmra.mxu0 %v388
      %v788 = vpop.f32.mrf.mxu0
      %v789 = vadd.f32 %v360, %v788
      %790 = vmatmul.f32.gmra.mxu0 %v391
      %v791 = vpop.f32.mrf.mxu0
      %v792 = vadd.f32 %v360, %v791
      %793 = vmatmul.f32.gmra.mxu0 %v394
      %v794 = vpop.f32.mrf.mxu0
      %v795 = vadd.f32 %v360, %v794
      %796 = vmatmul.f32.gmra.mxu0 %v397
      %v797 = vpop.f32.mrf.mxu0
      %v798 = vadd.f32 %v360, %v797
      %799 = vmatmul.f32.gmra.mxu0 %v400
      %v800 = vpop.f32.mrf.mxu0
      %v801 = vadd.f32 %v360, %v800
      %802 = vmatmul.f32.gmra.mxu0 %v403
      %v803 = vpop.f32.mrf.mxu0
      %v804 = vadd.f32 %v360, %v803
      %805 = vmatmul.f32.gmra.mxu0 %v406
      %v806 = vpop.f32.mrf.mxu0
      %v807 = vadd.f32 %v360, %v806
      %808 = vmatmul.f32.gmra.mxu0 %v409
      %v809 = vpop.f32.mrf.mxu0
      %v810 = vadd.f32 %v360, %v809
      %811 = vmatmul.f32.gmra.mxu0 %v412
      %v812 = vpop.f32.mrf.mxu0
      %v813 = vadd.f32 %v360, %v812
      %814 = vmatmul.f32.gmra.mxu0 %v415
      %v815 = vpop.f32.mrf.mxu0
      %v816 = vadd.f32 %v360, %v815
      %817 = vmatmul.f32.gmra.mxu0 %v418
      %v818 = vpop.f32.mrf.mxu0
      %v819 = vadd.f32 %v360, %v818
      %820 = vmatmul.f32.gmra.mxu0 %v421
      %v821 = vpop.f32.mrf.mxu0
      %v822 = vadd.f32 %v360, %v821
      %823 = vmatmul.f32.gmra.mxu0 %v424
      %v824 = vpop.f32.mrf.mxu0
      %v825 = vadd.f32 %v360, %v824
      %826 = vmatmul.f32.gmra.mxu0 %v427
      %v827 = vpop.f32.mrf.mxu0
      %v828 = vadd.f32 %v360, %v827
      %829 = vmatmul.f32.gmra.mxu0 %v430
      %v830 = vpop.f32.mrf.mxu0
      %v831 = vadd.f32 %v360, %v830
      %832 = vmatmul.f32.gmra.mxu0 %v433
      %v833 = vpop.f32.mrf.mxu0
      %v834 = vadd.f32 %v360, %v833
      %835 = vmatmul.f32.gmra.mxu0 %v436
      %v836 = vpop.f32.mrf.mxu0
      %v837 = vadd.f32 %v360, %v836
      %838 = vmatmul.f32.gmra.mxu0 %v439
      %v839 = vpop.f32.mrf.mxu0
      %v840 = vadd.f32 %v360, %v839
      %841 = vmatmul.f32.gmra.mxu0 %v442
      %v842 = vpop.f32.mrf.mxu0
      %v843 = vadd.f32 %v360, %v842
      %844 = vmatmul.f32.gmra.mxu0 %v445
      %v845 = vpop.f32.mrf.mxu0
      %v846 = vadd.f32 %v360, %v845
      %847 = vmatmul.f32.gmra.mxu0 %v448
      %v848 = vpop.f32.mrf.mxu0
      %v849 = vadd.f32 %v360, %v848
      %850 = vmatmul.f32.gmra.mxu0 %v451
      %v851 = vpop.f32.mrf.mxu0
      %v852 = vadd.f32 %v360, %v851
      %853 = vmatmul.f32.gmra.mxu0 %v454
      %v854 = vpop.f32.mrf.mxu0
      %v855 = vadd.f32 %v360, %v854
      %856 = vmatmul.f32.gmra.mxu0 %v457
      %v857 = vpop.f32.mrf.mxu0
      %v858 = vadd.f32 %v360, %v857
      %859 = vmatmul.f32.gmra.mxu0 %v460
      %v860 = vpop.f32.mrf.mxu0
      %v861 = vadd.f32 %v360, %v860
      %862 = vmatmul.f32.gmra.mxu0 %v463
      %v863 = vpop.f32.mrf.mxu0
      %v864 = vadd.f32 %v360, %v863
      %865 = vmatmul.f32.gmra.mxu0 %v466
      %v866 = vpop.f32.mrf.mxu0
      %v867 = vadd.f32 %v360, %v866
      %868 = vmatmul.f32.gmra.mxu0 %v469
      %v869 = vpop.f32.mrf.mxu0
      %v870 = vadd.f32 %v360, %v869
      %871 = vmatmul.f32.gmra.mxu0 %v472
      %v872 = vpop.f32.mrf.mxu0
      %v873 = vadd.f32 %v360, %v872
      %874 = vmatmul.f32.gmra.mxu0 %v475
      %v875 = vpop.f32.mrf.mxu0
      %v876 = vadd.f32 %v360, %v875
      %877 = vmatmul.f32.gmra.mxu0 %v478
      %v878 = vpop.f32.mrf.mxu0
      %v879 = vadd.f32 %v360, %v878
      %880 = vmatmul.f32.gmra.mxu0 %v481
      %v881 = vpop.f32.mrf.mxu0
      %v882 = vadd.f32 %v360, %v881
      %883 = vmatmul.f32.gmra.mxu0 %v484
      %v884 = vpop.f32.mrf.mxu0
      %v885 = vadd.f32 %v360, %v884
      %886 = vmatmul.f32.gmra.mxu0 %v487
      %v887 = vpop.f32.mrf.mxu0
      %v888 = vadd.f32 %v360, %v887
      %889 = vmatmul.f32.gmra.mxu0 %v490
      %v890 = vpop.f32.mrf.mxu0
      %v891 = vadd.f32 %v360, %v890
      %892 = vmatmul.f32.gmra.mxu0 %v493
      %v893 = vpop.f32.mrf.mxu0
      %v894 = vadd.f32 %v360, %v893
      %895 = vmatmul.f32.gmra.mxu0 %v496
      %v896 = vpop.f32.mrf.mxu0
      %v897 = vadd.f32 %v360, %v896
      %898 = vmatmul.f32.gmra.mxu0 %v499
      %v899 = vpop.f32.mrf.mxu0
      %v900 = vadd.f32 %v360, %v899
      %901 = vmatmul.f32.gmra.mxu0 %v502
      %v902 = vpop.f32.mrf.mxu0
      %v903 = vadd.f32 %v360, %v902
      %904 = vmatmul.f32.gmra.mxu0 %v505
      %v905 = vpop.f32.mrf.mxu0
      %v906 = vadd.f32 %v360, %v905
      %907 = vmatmul.f32.gmra.mxu0 %v508
      %v908 = vpop.f32.mrf.mxu0
      %v909 = vadd.f32 %v360, %v908
      %910 = vmatmul.f32.gmra.mxu0 %v511
      %v911 = vpop.f32.mrf.mxu0
      %v912 = vadd.f32 %v360, %v911
      %913 = vmatmul.f32.gmra.mxu0 %v514
      %v914 = vpop.f32.mrf.mxu0
      %v915 = vadd.f32 %v360, %v914
      %916 = vmatmul.f32.gmra.mxu0 %v517
      %v917 = vpop.f32.mrf.mxu0
      %v918 = vadd.f32 %v360, %v917
      %919 = vmatmul.f32.gmra.mxu0 %v520
      %v920 = vpop.f32.mrf.mxu0
      %v921 = vadd.f32 %v360, %v920
      %922 = vmatmul.f32.gmra.mxu0 %v523
      %v923 = vpop.f32.mrf.mxu0
      %v924 = vadd.f32 %v360, %v923
      %925 = vmatmul.f32.gmra.mxu0 %v526
      %v926 = vpop.f32.mrf.mxu0
      %v927 = vadd.f32 %v360, %v926
      %928 = vmatmul.f32.gmra.mxu0 %v529
      %v929 = vpop.f32.mrf.mxu0
      %v930 = vadd.f32 %v360, %v929
      %931 = vmatmul.f32.gmra.mxu0 %v532
      %v932 = vpop.f32.mrf.mxu0
      %v933 = vadd.f32 %v360, %v932
      %934 = vmatmul.f32.gmra.mxu0 %v535
      %v935 = vpop.f32.mrf.mxu0
      %v936 = vadd.f32 %v360, %v935
      %937 = vmatmul.f32.gmra.mxu0 %v538
      %v938 = vpop.f32.mrf.mxu0
      %v939 = vadd.f32 %v360, %v938
      %940 = vmatmul.f32.gmra.mxu0 %v541
      %v941 = vpop.f32.mrf.mxu0
      %v942 = vadd.f32 %v360, %v941
      %943 = vmatmul.f32.gmra.mxu0 %v544
      %v944 = vpop.f32.mrf.mxu0
      %v945 = vadd.f32 %v360, %v944
      %946 = vmatmul.f32.gmra.mxu0 %v547
      %v947 = vpop.f32.mrf.mxu0
      %v948 = vadd.f32 %v360, %v947
      %949 = vmatmul.f32.gmra.mxu0 %v550
      %v950 = vpop.f32.mrf.mxu0
      %v951 = vadd.f32 %v360, %v950
      %952 = vmatmul.f32.gmra.mxu0 %v553
      %v953 = vpop.f32.mrf.mxu0
      %v954 = vadd.f32 %v360, %v953
      %955 = vmatmul.f32.gmra.mxu0 %v556
      %v956 = vpop.f32.mrf.mxu0
      %v957 = vadd.f32 %v360, %v956
      %958 = vmatmul.f32.gmra.mxu0 %v559
      %v959 = vpop.f32.mrf.mxu0
      %v960 = vadd.f32 %v360, %v959
      %961 = vmatmul.f32.gmra.mxu0 %v562
      %v962 = vpop.f32.mrf.mxu0
      %v963 = vadd.f32 %v360, %v962
      %964 = vmatmul.f32.gmra.mxu0 %v565
      %v965 = vpop.f32.mrf.mxu0
      %v966 = vadd.f32 %v360, %v965
      %967 = vmatmul.f32.gmra.mxu0 %v568
      %v968 = vpop.f32.mrf.mxu0
      %v969 = vadd.f32 %v360, %v968
      %970 = vmatmul.f32.gmra.mxu0 %v571
      %v971 = vpop.f32.mrf.mxu0
      %v972 = vadd.f32 %v360, %v971
      %973 = vmatmul.f32.gmra.mxu0 %v574
      %v974 = vpop.f32.mrf.mxu0
      %v975 = vadd.f32 %v360, %v974
      %976 = vmatmul.f32.gmra.mxu0 %v577
      %v977 = vpop.f32.mrf.mxu0
      %v978 = vadd.f32 %v360, %v977
      %979 = vmatmul.f32.gmra.mxu0 %v580
      %v980 = vpop.f32.mrf.mxu0
      %v981 = vadd.f32 %v360, %v980
      %982 = vmatmul.f32.gmra.mxu0 %v583
      %v983 = vpop.f32.mrf.mxu0
      %v984 = vadd.f32 %v360, %v983
      %985 = vmatmul.f32.gmra.mxu0 %v586
      %v986 = vpop.f32.mrf.mxu0
      %v987 = vadd.f32 %v360, %v986
      %988 = vmatmul.f32.gmra.mxu0 %v589
      %v989 = vpop.f32.mrf.mxu0
      %v990 = vadd.f32 %v360, %v989
      %991 = vmatmul.f32.gmra.mxu0 %v592
      %v992 = vpop.f32.mrf.mxu0
      %v993 = vadd.f32 %v360, %v992
      %994 = vmatmul.f32.gmra.mxu0 %v595
      %v995 = vpop.f32.mrf.mxu0
      %v996 = vadd.f32 %v360, %v995
      %997 = vmatmul.f32.gmra.mxu0 %v598
      %v998 = vpop.f32.mrf.mxu0
      %v999 = vadd.f32 %v360, %v998
      %1000 = vmatmul.f32.gmra.mxu0 %v601
      %v1001 = vpop.f32.mrf.mxu0
      %v1002 = vadd.f32 %v360, %v1001
      %1003 = vmatmul.f32.gmra.mxu0 %v604
      %v1004 = vpop.f32.mrf.mxu0
      %v1005 = vadd.f32 %v360, %v1004
      %1006 = vmatmul.f32.gmra.mxu0 %v607
      %v1007 = vpop.f32.mrf.mxu0
      %v1008 = vadd.f32 %v360, %v1007
      %1009 = vmatmul.f32.gmra.mxu0 %v610
      %v1010 = vpop.f32.mrf.mxu0
      %v1011 = vadd.f32 %v360, %v1010
      %1012 = vmatmul.f32.gmra.mxu0 %v613
      %v1013 = vpop.f32.mrf.mxu0
      %v1014 = vadd.f32 %v360, %v1013
      %1015 = vmatmul.f32.gmra.mxu0 %v616
      %v1016 = vpop.f32.mrf.mxu0
      %v1017 = vadd.f32 %v360, %v1016
      %1018 = vmatmul.f32.gmra.mxu0 %v619
      %v1019 = vpop.f32.mrf.mxu0
      %v1020 = vadd.f32 %v360, %v1019
      %1021 = vmatmul.f32.gmra.mxu0 %v622
      %v1022 = vpop.f32.mrf.mxu0
      %v1023 = vadd.f32 %v360, %v1022
      %1024 = vmatmul.f32.gmra.mxu0 %v625
      %v1025 = vpop.f32.mrf.mxu0
      %v1026 = vadd.f32 %v360, %v1025
      %1027 = vmatmul.f32.gmra.mxu0 %v628
      %v1028 = vpop.f32.mrf.mxu0
      %v1029 = vadd.f32 %v360, %v1028
      %1030 = vmatmul.f32.gmra.mxu0 %v631
      %v1031 = vpop.f32.mrf.mxu0
      %v1032 = vadd.f32 %v360, %v1031
      %1033 = vmatmul.f32.gmra.mxu0 %v634
      %v1034 = vpop.f32.mrf.mxu0
      %v1035 = vadd.f32 %v360, %v1034
      %1036 = vmatmul.f32.gmra.mxu0 %v637
      %v1037 = vpop.f32.mrf.mxu0
      %v1038 = vadd.f32 %v360, %v1037
      %1039 = vmatmul.f32.gmra.mxu0 %v640
      %v1040 = vpop.f32.mrf.mxu0
      %v1041 = vadd.f32 %v360, %v1040
      %1042 = vmatmul.f32.gmra.mxu0 %v643
      %v1043 = vpop.f32.mrf.mxu0
      %v1044 = vadd.f32 %v360, %v1043
      %1045 = vmatmul.f32.gmra.mxu0 %v646
      %v1046 = vpop.f32.mrf.mxu0
      %v1047 = vadd.f32 %v360, %v1046
      %1048 = vmatmul.f32.gmra.mxu0 %v649
      %v1049 = vpop.f32.mrf.mxu0
      %v1050 = vadd.f32 %v360, %v1049
      %1051 = vmatmul.f32.gmra.mxu0 %v652
      %v1052 = vpop.f32.mrf.mxu0
      %v1053 = vadd.f32 %v360, %v1052
      %1054 = vmatmul.f32.gmra.mxu0 %v655
      %v1055 = vpop.f32.mrf.mxu0
      %v1056 = vadd.f32 %v360, %v1055
      %1057 = vmatmul.f32.gmra.mxu0 %v658
      %v1058 = vpop.f32.mrf.mxu0
      %v1059 = vadd.f32 %v360, %v1058
      %1060 = vmatmul.f32.gmra.mxu0 %v661
      %v1061 = vpop.f32.mrf.mxu0
      %v1062 = vadd.f32 %v360, %v1061
      %1063 = vmatmul.f32.gmra.mxu0 %v664
      %v1064 = vpop.f32.mrf.mxu0
      %v1065 = vadd.f32 %v360, %v1064
      %1066 = vmatmul.f32.gmra.mxu0 %v667
      %v1067 = vpop.f32.mrf.mxu0
      %v1068 = vadd.f32 %v360, %v1067
      %1069 = vmatmul.f32.gmra.mxu0 %v670
      %v1070 = vpop.f32.mrf.mxu0
      %v1071 = vadd.f32 %v360, %v1070
      %1072 = vmatmul.f32.gmra.mxu0 %v673
      %v1073 = vpop.f32.mrf.mxu0
      %v1074 = vadd.f32 %v360, %v1073
      %1075 = vmatmul.f32.gmra.mxu0 %v676
      %v1076 = vpop.f32.mrf.mxu0
      %v1077 = vadd.f32 %v360, %v1076
      %1078 = vmatmul.f32.gmra.mxu0 %v679
      %v1079 = vpop.f32.mrf.mxu0
      %v1080 = vadd.f32 %v360, %v1079
      %1081 = vmatmul.f32.gmra.mxu0 %v682
      %v1082 = vpop.f32.mrf.mxu0
      %v1083 = vadd.f32 %v360, %v1082
      %1084 = vmatmul.f32.gmra.mxu0 %v685
      %v1085 = vpop.f32.mrf.mxu0
      %v1086 = vadd.f32 %v360, %v1085
      %1087 = vmatmul.f32.gmra.mxu0 %v688
      %v1088 = vpop.f32.mrf.mxu0
      %v1089 = vadd.f32 %v360, %v1088
      %1090 = vmatmul.f32.gmra.mxu0 %v691
      %v1091 = vpop.f32.mrf.mxu0
      %v1092 = vadd.f32 %v360, %v1091
      %1093 = vmatmul.f32.gmra.mxu0 %v694
      %v1094 = vpop.f32.mrf.mxu0
      %v1095 = vadd.f32 %v360, %v1094
      %1096 = vmatmul.f32.gmra.mxu0 %v697
      %v1097 = vpop.f32.mrf.mxu0
      %v1098 = vadd.f32 %v360, %v1097
      %1099 = vmatmul.f32.gmra.mxu0 %v700
      %v1100 = vpop.f32.mrf.mxu0
      %v1101 = vadd.f32 %v360, %v1100
      %1102 = vmatmul.f32.gmra.mxu0 %v703
      %v1103 = vpop.f32.mrf.mxu0
      %v1104 = vadd.f32 %v360, %v1103
      %1105 = vmatmul.f32.gmra.mxu0 %v706
      %v1106 = vpop.f32.mrf.mxu0
      %v1107 = vadd.f32 %v360, %v1106
      %1108 = vmatmul.f32.gmra.mxu0 %v709
      %v1109 = vpop.f32.mrf.mxu0
      %v1110 = vadd.f32 %v360, %v1109
      %1111 = vmatmul.f32.gmra.mxu0 %v712
      %v1112 = vpop.f32.mrf.mxu0
      %v1113 = vadd.f32 %v360, %v1112
      %1114 = vmatmul.f32.gmra.mxu0 %v715
      %v1115 = vpop.f32.mrf.mxu0
      %v1116 = vadd.f32 %v360, %v1115
      %1117 = vmatmul.f32.gmra.mxu0 %v718
      %v1118 = vpop.f32.mrf.mxu0
      %v1119 = vadd.f32 %v360, %v1118
      %1120 = vmatmul.f32.gmra.mxu0 %v721
      %v1121 = vpop.f32.mrf.mxu0
      %v1122 = vadd.f32 %v360, %v1121
      %1123 = vmatmul.f32.gmra.mxu0 %v724
      %v1124 = vpop.f32.mrf.mxu0
      %v1125 = vadd.f32 %v360, %v1124
      %1126 = vmatmul.f32.gmra.mxu0 %v727
      %v1127 = vpop.f32.mrf.mxu0
      %v1128 = vadd.f32 %v360, %v1127
      %1129 = vmatmul.f32.gmra.mxu0 %v730
      %v1130 = vpop.f32.mrf.mxu0
      %v1131 = vadd.f32 %v360, %v1130
      %1132 = vmatmul.f32.gmra.mxu0 %v733
      %v1133 = vpop.f32.mrf.mxu0
      %v1134 = vadd.f32 %v360, %v1133
      %1135 = vmatmul.f32.gmra.mxu0 %v736
      %v1136 = vpop.f32.mrf.mxu0
      %v1137 = vadd.f32 %v360, %v1136
      %1138 = vmatmul.f32.gmra.mxu0 %v739
      %v1139 = vpop.f32.mrf.mxu0
      %v1140 = vadd.f32 %v360, %v1139
      %1141 = vmatmul.f32.gmra.mxu0 %v742
      %v1142 = vpop.f32.mrf.mxu0
      %v1143 = vadd.f32 %v360, %v1142
      %1144 = vmatmul.f32.gmra.mxu0 %v745
      %v1145 = vpop.f32.mrf.mxu0
      %v1146 = vadd.f32 %v360, %v1145
      %1147 = vdwg.mxu0
      %v1148 = vmax.f32 %v765, 0.0
      %v1149 = vmax.f32 %v768, 0.0
      %v1150 = vmax.f32 %v771, 0.0
      %v1151 = vmax.f32 %v774, 0.0
      %v1152 = vmax.f32 %v777, 0.0
      %v1153 = vmax.f32 %v780, 0.0
      %v1154 = vmax.f32 %v783, 0.0
      %v1155 = vmax.f32 %v786, 0.0
      %v1156 = vmax.f32 %v789, 0.0
      %v1157 = vmax.f32 %v792, 0.0
      %v1158 = vmax.f32 %v795, 0.0
      %v1159 = vmax.f32 %v798, 0.0
      %v1160 = vmax.f32 %v801, 0.0
      %v1161 = vmax.f32 %v804, 0.0
      %v1162 = vmax.f32 %v807, 0.0
      %v1163 = vmax.f32 %v810, 0.0
      %v1164 = vmax.f32 %v813, 0.0
      %v1165 = vmax.f32 %v816, 0.0
      %v1166 = vmax.f32 %v819, 0.0
      %v1167 = vmax.f32 %v822, 0.0
      %v1168 = vmax.f32 %v825, 0.0
      %v1169 = vmax.f32 %v828, 0.0
      %v1170 = vmax.f32 %v831, 0.0
      %v1171 = vmax.f32 %v834, 0.0
      %v1172 = vmax.f32 %v837, 0.0
      %v1173 = vmax.f32 %v840, 0.0
      %v1174 = vmax.f32 %v843, 0.0
      %v1175 = vmax.f32 %v846, 0.0
      %v1176 = vmax.f32 %v849, 0.0
      %v1177 = vmax.f32 %v852, 0.0
      %v1178 = vmax.f32 %v855, 0.0
      %v1179 = vmax.f32 %v858, 0.0
      %v1180 = vmax.f32 %v861, 0.0
      %v1181 = vmax.f32 %v864, 0.0
      %v1182 = vmax.f32 %v867, 0.0
      %v1183 = vmax.f32 %v870, 0.0
      %v1184 = vmax.f32 %v873, 0.0
      %v1185 = vmax.f32 %v876, 0.0
      %v1186 = vmax.f32 %v879, 0.0
      %v1187 = vmax.f32 %v882, 0.0
      %v1188 = vmax.f32 %v885, 0.0
      %v1189 = vmax.f32 %v888, 0.0
      %v1190 = vmax.f32 %v891, 0.0
      %v1191 = vmax.f32 %v894, 0.0
      %v1192 = vmax.f32 %v897, 0.0
      %v1193 = vmax.f32 %v900, 0.0
      %v1194 = vmax.f32 %v903, 0.0
      %v1195 = vmax.f32 %v906, 0.0
      %v1196 = vmax.f32 %v909, 0.0
      %v1197 = vmax.f32 %v912, 0.0
      %v1198 = vmax.f32 %v915, 0.0
      %v1199 = vmax.f32 %v918, 0.0
      %v1200 = vmax.f32 %v921, 0.0
      %v1201 = vmax.f32 %v924, 0.0
      %v1202 = vmax.f32 %v927, 0.0
      %v1203 = vmax.f32 %v930, 0.0
      %v1204 = vmax.f32 %v933, 0.0
      %v1205 = vmax.f32 %v936, 0.0
      %v1206 = vmax.f32 %v939, 0.0
      %v1207 = vmax.f32 %v942, 0.0
      %v1208 = vmax.f32 %v945, 0.0
      %v1209 = vmax.f32 %v948, 0.0
      %v1210 = vmax.f32 %v951, 0.0
      %v1211 = vmax.f32 %v954, 0.0
      %v1212 = vmax.f32 %v957, 0.0
      %v1213 = vmax.f32 %v960, 0.0
      %v1214 = vmax.f32 %v963, 0.0
      %v1215 = vmax.f32 %v966, 0.0
      %v1216 = vmax.f32 %v969, 0.0
      %v1217 = vmax.f32 %v972, 0.0
      %v1218 = vmax.f32 %v975, 0.0
      %v1219 = vmax.f32 %v978, 0.0
      %v1220 = vmax.f32 %v981, 0.0
      %v1221 = vmax.f32 %v984, 0.0
      %v1222 = vmax.f32 %v987, 0.0
      %v1223 = vmax.f32 %v990, 0.0
      %v1224 = vmax.f32 %v993, 0.0
      %v1225 = vmax.f32 %v996, 0.0
      %v1226 = vmax.f32 %v999, 0.0
      %v1227 = vmax.f32 %v1002, 0.0
      %v1228 = vmax.f32 %v1005, 0.0
      %v1229 = vmax.f32 %v1008, 0.0
      %v1230 = vmax.f32 %v1011, 0.0
      %v1231 = vmax.f32 %v1014, 0.0
      %v1232 = vmax.f32 %v1017, 0.0
      %v1233 = vmax.f32 %v1020, 0.0
      %v1234 = vmax.f32 %v1023, 0.0
      %v1235 = vmax.f32 %v1026, 0.0
      %v1236 = vmax.f32 %v1029, 0.0
      %v1237 = vmax.f32 %v1032, 0.0
      %v1238 = vmax.f32 %v1035, 0.0
      %v1239 = vmax.f32 %v1038, 0.0
      %v1240 = vmax.f32 %v1041, 0.0
      %v1241 = vmax.f32 %v1044, 0.0
      %v1242 = vmax.f32 %v1047, 0.0
      %v1243 = vmax.f32 %v1050, 0.0
      %v1244 = vmax.f32 %v1053, 0.0
      %v1245 = vmax.f32 %v1056, 0.0
      %v1246 = vmax.f32 %v1059, 0.0
      %v1247 = vmax.f32 %v1062, 0.0
      %v1248 = vmax.f32 %v1065, 0.0
      %v1249 = vmax.f32 %v1068, 0.0
      %v1250 = vmax.f32 %v1071, 0.0
      %v1251 = vmax.f32 %v1074, 0.0
      %v1252 = vmax.f32 %v1077, 0.0
      %v1253 = vmax.f32 %v1080, 0.0
      %v1254 = vmax.f32 %v1083, 0.0
      %v1255 = vmax.f32 %v1086, 0.0
      %v1256 = vmax.f32 %v1089, 0.0
      %v1257 = vmax.f32 %v1092, 0.0
      %v1258 = vmax.f32 %v1095, 0.0
      %v1259 = vmax.f32 %v1098, 0.0
      %v1260 = vmax.f32 %v1101, 0.0
      %v1261 = vmax.f32 %v1104, 0.0
      %v1262 = vmax.f32 %v1107, 0.0
      %v1263 = vmax.f32 %v1110, 0.0
      %v1264 = vmax.f32 %v1113, 0.0
      %v1265 = vmax.f32 %v1116, 0.0
      %v1266 = vmax.f32 %v1119, 0.0
      %v1267 = vmax.f32 %v1122, 0.0
      %v1268 = vmax.f32 %v1125, 0.0
      %v1269 = vmax.f32 %v1128, 0.0
      %v1270 = vmax.f32 %v1131, 0.0
      %v1271 = vmax.f32 %v1134, 0.0
      %v1272 = vmax.f32 %v1137, 0.0
      %v1273 = vmax.f32 %v1140, 0.0
      %v1274 = vmax.f32 %v1143, 0.0
      %v1275 = vmax.f32 %v1146, 0.0
      %v1276 = vld [vmem:[%s3] sm:$0xff]
      %v1277 = vld [vmem:[%s3 + $0x8] sm:$0xff]
      %v1278 = vld [vmem:[%s3 + $0x10] sm:$0xff]
      %v1279 = vld [vmem:[%s3 + $0x18] sm:$0xff]
      %v1280 = vld [vmem:[%s4] sm:$0x1]
      %v1282 = vperm.slane %v1280, 0
      %vm1284 = vcmask 261120
      %v1286 = vsel %vm1284, %v1148, 0
      %v1289 = vsel %vm1284, %v1149, 0
      %v1292 = vsel %vm1284, %v1150, 0
      %v1295 = vsel %vm1284, %v1151, 0
      %v1298 = vsel %vm1284, %v1152, 0
      %v1301 = vsel %vm1284, %v1153, 0
      %v1304 = vsel %vm1284, %v1154, 0
      %v1307 = vsel %vm1284, %v1155, 0
      %v1310 = vsel %vm1284, %v1156, 0
      %v1313 = vsel %vm1284, %v1157, 0
      %v1316 = vsel %vm1284, %v1158, 0
      %v1319 = vsel %vm1284, %v1159, 0
      %v1322 = vsel %vm1284, %v1160, 0
      %v1325 = vsel %vm1284, %v1161, 0
      %v1328 = vsel %vm1284, %v1162, 0
      %v1331 = vsel %vm1284, %v1163, 0
      %v1334 = vsel %vm1284, %v1164, 0
      %v1337 = vsel %vm1284, %v1165, 0
      %v1340 = vsel %vm1284, %v1166, 0
      %v1343 = vsel %vm1284, %v1167, 0
      %v1346 = vsel %vm1284, %v1168, 0
      %v1349 = vsel %vm1284, %v1169, 0
      %v1352 = vsel %vm1284, %v1170, 0
      %v1355 = vsel %vm1284, %v1171, 0
      %v1358 = vsel %vm1284, %v1172, 0
      %v1361 = vsel %vm1284, %v1173, 0
      %v1364 = vsel %vm1284, %v1174, 0
      %v1367 = vsel %vm1284, %v1175, 0
      %v1370 = vsel %vm1284, %v1176, 0
      %v1373 = vsel %vm1284, %v1177, 0
      %v1376 = vsel %vm1284, %v1178, 0
      %v1379 = vsel %vm1284, %v1179, 0
      %v1382 = vsel %vm1284, %v1180, 0
      %v1385 = vsel %vm1284, %v1181, 0
      %v1388 = vsel %vm1284, %v1182, 0
      %v1391 = vsel %vm1284, %v1183, 0
      %v1394 = vsel %vm1284, %v1184, 0
      %v1397 = vsel %vm1284, %v1185, 0
      %v1400 = vsel %vm1284, %v1186, 0
      %v1403 = vsel %vm1284, %v1187, 0
      %v1406 = vsel %vm1284, %v1188, 0
      %v1409 = vsel %vm1284, %v1189, 0
      %v1412 = vsel %vm1284, %v1190, 0
      %v1415 = vsel %vm1284, %v1191, 0
      %v1418 = vsel %vm1284, %v1192, 0
      %v1421 = vsel %vm1284, %v1193, 0
      %v1424 = vsel %vm1284, %v1194, 0
      %v1427 = vsel %vm1284, %v1195, 0
      %v1430 = vsel %vm1284, %v1196, 0
      %v1433 = vsel %vm1284, %v1197, 0
      %v1436 = vsel %vm1284, %v1198, 0
      %v1439 = vsel %vm1284, %v1199, 0
      %v1442 = vsel %vm1284, %v1200, 0
      %v1445 = vsel %vm1284, %v1201, 0
      %v1448 = vsel %vm1284, %v1202, 0
      %v1451 = vsel %vm1284, %v1203, 0
      %v1454 = vsel %vm1284, %v1204, 0
      %v1457 = vsel %vm1284, %v1205, 0
      %v1460 = vsel %vm1284, %v1206, 0
      %v1463 = vsel %vm1284, %v1207, 0
      %v1466 = vsel %vm1284, %v1208, 0
      %v1469 = vsel %vm1284, %v1209, 0
      %v1472 = vsel %vm1284, %v1210, 0
      %v1475 = vsel %vm1284, %v1211, 0
      %v1478 = vsel %vm1284, %v1212, 0
      %v1481 = vsel %vm1284, %v1213, 0
      %v1484 = vsel %vm1284, %v1214, 0
      %v1487 = vsel %vm1284, %v1215, 0
      %v1490 = vsel %vm1284, %v1216, 0
      %v1493 = vsel %vm1284, %v1217, 0
      %v1496 = vsel %vm1284, %v1218, 0
      %v1499 = vsel %vm1284, %v1219, 0
      %v1502 = vsel %vm1284, %v1220, 0
      %v1505 = vsel %vm1284, %v1221, 0
      %v1508 = vsel %vm1284, %v1222, 0
      %v1511 = vsel %vm1284, %v1223, 0
      %v1514 = vsel %vm1284, %v1224, 0
      %v1517 = vsel %vm1284, %v1225, 0
      %v1520 = vsel %vm1284, %v1226, 0
      %v1523 = vsel %vm1284, %v1227, 0
      %v1526 = vsel %vm1284, %v1228, 0
      %v1529 = vsel %vm1284, %v1229, 0
      %v1532 = vsel %vm1284, %v1230, 0
      %v1535 = vsel %vm1284, %v1231, 0
      %v1538 = vsel %vm1284, %v1232, 0
      %v1541 = vsel %vm1284, %v1233, 0
      %v1544 = vsel %vm1284, %v1234, 0
      %v1547 = vsel %vm1284, %v1235, 0
      %v1550 = vsel %vm1284, %v1236, 0
      %v1553 = vsel %vm1284, %v1237, 0
      %v1556 = vsel %vm1284, %v1238, 0
      %v1559 = vsel %vm1284, %v1239, 0
      %v1562 = vsel %vm1284, %v1240, 0
      %v1565 = vsel %vm1284, %v1241, 0
      %v1568 = vsel %vm1284, %v1242, 0
      %v1571 = vsel %vm1284, %v1243, 0
      %v1574 = vsel %vm1284, %v1244, 0
      %v1577 = vsel %vm1284, %v1245, 0
      %v1580 = vsel %vm1284, %v1246, 0
      %v1583 = vsel %vm1284, %v1247, 0
      %v1586 = vsel %vm1284, %v1248, 0
      %v1589 = vsel %vm1284, %v1249, 0
      %v1592 = vsel %vm1284, %v1250, 0
      %v1595 = vsel %vm1284, %v1251, 0
      %v1598 = vsel %vm1284, %v1252, 0
      %v1601 = vsel %vm1284, %v1253, 0
      %v1604 = vsel %vm1284, %v1254, 0
      %v1607 = vsel %vm1284, %v1255, 0
      %v1610 = vsel %vm1284, %v1256, 0
      %v1613 = vsel %vm1284, %v1257, 0
      %v1616 = vsel %vm1284, %v1258, 0
      %v1619 = vsel %vm1284, %v1259, 0
      %v1622 = vsel %vm1284, %v1260, 0
      %v1625 = vsel %vm1284, %v1261, 0
      %v1628 = vsel %vm1284, %v1262, 0
      %v1631 = vsel %vm1284, %v1263, 0
      %v1634 = vsel %vm1284, %v1264, 0
      %v1637 = vsel %vm1284, %v1265, 0
      %v1640 = vsel %vm1284, %v1266, 0
      %v1643 = vsel %vm1284, %v1267, 0
      %v1646 = vsel %vm1284, %v1268, 0
      %v1649 = vsel %vm1284, %v1269, 0
      %v1652 = vsel %vm1284, %v1270, 0
      %v1655 = vsel %vm1284, %v1271, 0
      %v1658 = vsel %vm1284, %v1272, 0
      %v1661 = vsel %vm1284, %v1273, 0
      %v1664 = vsel %vm1284, %v1274, 0
      %v1667 = vsel %vm1284, %v1275, 0
      %1669 = vmatpush.msra.mxu0 0.0
      %1670 = vmatpush.msra.mxu0 0.0
      %1671 = vmatpush.msra.mxu0 0.0
      %1672 = vmatpush.msra.mxu0 0.0
      %1673 = vmatpush.msra.mxu0 0.0
      %1674 = vmatpush.msra.mxu0 0.0
      %1675 = vmatpush.msra.mxu0 0.0
      %1676 = vmatpush.msra.mxu0 0.0
      %1677 = vmatpush.msra.mxu0 0.0
      %1678 = vmatpush.msra.mxu0 0.0
      %1679 = vmatpush.msra.mxu0 0.0
      %1680 = vmatpush.msra.mxu0 0.0
      %1681 = vmatpush.msra.mxu0 %v1279
      %1682 = vmatpush.msra.mxu0 %v1278
      %1683 = vmatpush.msra.mxu0 %v1277
      %1684 = vmatpush.msra.mxu0 %v1276
      %1685 = vmatmul.f32.gmra.mxu0 %v1286
      %v1686 = vpop.f32.mrf.mxu0
      %v1687 = vadd.f32 %v1282, %v1686
      %1688 = vmatmul.f32.gmra.mxu0 %v1289
      %v1689 = vpop.f32.mrf.mxu0
      %v1690 = vadd.f32 %v1282, %v1689
      %1691 = vmatmul.f32.gmra.mxu0 %v1292
      %v1692 = vpop.f32.mrf.mxu0
      %v1693 = vadd.f32 %v1282, %v1692
      %1694 = vmatmul.f32.gmra.mxu0 %v1295
      %v1695 = vpop.f32.mrf.mxu0
      %v1696 = vadd.f32 %v1282, %v1695
      %1697 = vmatmul.f32.gmra.mxu0 %v1298
      %v1698 = vpop.f32.mrf.mxu0
      %v1699 = vadd.f32 %v1282, %v1698
      %1700 = vmatmul.f32.gmra.mxu0 %v1301
      %v1701 = vpop.f32.mrf.mxu0
      %v1702 = vadd.f32 %v1282, %v1701
      %1703 = vmatmul.f32.gmra.mxu0 %v1304
      %v1704 = vpop.f32.mrf.mxu0
      %v1705 = vadd.f32 %v1282, %v1704
      %1706 = vmatmul.f32.gmra.mxu0 %v1307
      %v1707 = vpop.f32.mrf.mxu0
      %v1708 = vadd.f32 %v1282, %v1707
      %1709 = vmatmul.f32.gmra.mxu0 %v1310
      %v1710 = vpop.f32.mrf.mxu0
      %v1711 = vadd.f32 %v1282, %v1710
      %1712 = vmatmul.f32.gmra.mxu0 %v1313
      %v1713 = vpop.f32.mrf.mxu0
      %v1714 = vadd.f32 %v1282, %v1713
      %1715 = vmatmul.f32.gmra.mxu0 %v1316
      %v1716 = vpop.f32.mrf.mxu0
      %v1717 = vadd.f32 %v1282, %v1716
      %1718 = vmatmul.f32.gmra.mxu0 %v1319
      %v1719 = vpop.f32.mrf.mxu0
      %v1720 = vadd.f32 %v1282, %v1719
      %1721 = vmatmul.f32.gmra.mxu0 %v1322
      %v1722 = vpop.f32.mrf.mxu0
      %v1723 = vadd.f32 %v1282, %v1722
      %1724 = vmatmul.f32.gmra.mxu0 %v1325
      %v1725 = vpop.f32.mrf.mxu0
      %v1726 = vadd.f32 %v1282, %v1725
      %1727 = vmatmul.f32.gmra.mxu0 %v1328
      %v1728 = vpop.f32.mrf.mxu0
      %v1729 = vadd.f32 %v1282, %v1728
      %1730 = vmatmul.f32.gmra.mxu0 %v1331
      %v1731 = vpop.f32.mrf.mxu0
      %v1732 = vadd.f32 %v1282, %v1731
      %1733 = vmatmul.f32.gmra.mxu0 %v1334
      %v1734 = vpop.f32.mrf.mxu0
      %v1735 = vadd.f32 %v1282, %v1734
      %1736 = vmatmul.f32.gmra.mxu0 %v1337
      %v1737 = vpop.f32.mrf.mxu0
      %v1738 = vadd.f32 %v1282, %v1737
      %1739 = vmatmul.f32.gmra.mxu0 %v1340
      %v1740 = vpop.f32.mrf.mxu0
      %v1741 = vadd.f32 %v1282, %v1740
      %1742 = vmatmul.f32.gmra.mxu0 %v1343
      %v1743 = vpop.f32.mrf.mxu0
      %v1744 = vadd.f32 %v1282, %v1743
      %1745 = vmatmul.f32.gmra.mxu0 %v1346
      %v1746 = vpop.f32.mrf.mxu0
      %v1747 = vadd.f32 %v1282, %v1746
      %1748 = vmatmul.f32.gmra.mxu0 %v1349
      %v1749 = vpop.f32.mrf.mxu0
      %v1750 = vadd.f32 %v1282, %v1749
      %1751 = vmatmul.f32.gmra.mxu0 %v1352
      %v1752 = vpop.f32.mrf.mxu0
      %v1753 = vadd.f32 %v1282, %v1752
      %1754 = vmatmul.f32.gmra.mxu0 %v1355
      %v1755 = vpop.f32.mrf.mxu0
      %v1756 = vadd.f32 %v1282, %v1755
      %1757 = vmatmul.f32.gmra.mxu0 %v1358
      %v1758 = vpop.f32.mrf.mxu0
      %v1759 = vadd.f32 %v1282, %v1758
      %1760 = vmatmul.f32.gmra.mxu0 %v1361
      %v1761 = vpop.f32.mrf.mxu0
      %v1762 = vadd.f32 %v1282, %v1761
      %1763 = vmatmul.f32.gmra.mxu0 %v1364
      %v1764 = vpop.f32.mrf.mxu0
      %v1765 = vadd.f32 %v1282, %v1764
      %1766 = vmatmul.f32.gmra.mxu0 %v1367
      %v1767 = vpop.f32.mrf.mxu0
      %v1768 = vadd.f32 %v1282, %v1767
      %1769 = vmatmul.f32.gmra.mxu0 %v1370
      %v1770 = vpop.f32.mrf.mxu0
      %v1771 = vadd.f32 %v1282, %v1770
      %1772 = vmatmul.f32.gmra.mxu0 %v1373
      %v1773 = vpop.f32.mrf.mxu0
      %v1774 = vadd.f32 %v1282, %v1773
      %1775 = vmatmul.f32.gmra.mxu0 %v1376
      %v1776 = vpop.f32.mrf.mxu0
      %v1777 = vadd.f32 %v1282, %v1776
      %1778 = vmatmul.f32.gmra.mxu0 %v1379
      %v1779 = vpop.f32.mrf.mxu0
      %v1780 = vadd.f32 %v1282, %v1779
      %1781 = vmatmul.f32.gmra.mxu0 %v1382
      %v1782 = vpop.f32.mrf.mxu0
      %v1783 = vadd.f32 %v1282, %v1782
      %1784 = vmatmul.f32.gmra.mxu0 %v1385
      %v1785 = vpop.f32.mrf.mxu0
      %v1786 = vadd.f32 %v1282, %v1785
      %1787 = vmatmul.f32.gmra.mxu0 %v1388
      %v1788 = vpop.f32.mrf.mxu0
      %v1789 = vadd.f32 %v1282, %v1788
      %1790 = vmatmul.f32.gmra.mxu0 %v1391
      %v1791 = vpop.f32.mrf.mxu0
      %v1792 = vadd.f32 %v1282, %v1791
      %1793 = vmatmul.f32.gmra.mxu0 %v1394
      %v1794 = vpop.f32.mrf.mxu0
      %v1795 = vadd.f32 %v1282, %v1794
      %1796 = vmatmul.f32.gmra.mxu0 %v1397
      %v1797 = vpop.f32.mrf.mxu0
      %v1798 = vadd.f32 %v1282, %v1797
      %1799 = vmatmul.f32.gmra.mxu0 %v1400
      %v1800 = vpop.f32.mrf.mxu0
      %v1801 = vadd.f32 %v1282, %v1800
      %1802 = vmatmul.f32.gmra.mxu0 %v1403
      %v1803 = vpop.f32.mrf.mxu0
      %v1804 = vadd.f32 %v1282, %v1803
      %1805 = vmatmul.f32.gmra.mxu0 %v1406
      %v1806 = vpop.f32.mrf.mxu0
      %v1807 = vadd.f32 %v1282, %v1806
      %1808 = vmatmul.f32.gmra.mxu0 %v1409
      %v1809 = vpop.f32.mrf.mxu0
      %v1810 = vadd.f32 %v1282, %v1809
      %1811 = vmatmul.f32.gmra.mxu0 %v1412
      %v1812 = vpop.f32.mrf.mxu0
      %v1813 = vadd.f32 %v1282, %v1812
      %1814 = vmatmul.f32.gmra.mxu0 %v1415
      %v1815 = vpop.f32.mrf.mxu0
      %v1816 = vadd.f32 %v1282, %v1815
      %1817 = vmatmul.f32.gmra.mxu0 %v1418
      %v1818 = vpop.f32.mrf.mxu0
      %v1819 = vadd.f32 %v1282, %v1818
      %1820 = vmatmul.f32.gmra.mxu0 %v1421
      %v1821 = vpop.f32.mrf.mxu0
      %v1822 = vadd.f32 %v1282, %v1821
      %1823 = vmatmul.f32.gmra.mxu0 %v1424
      %v1824 = vpop.f32.mrf.mxu0
      %v1825 = vadd.f32 %v1282, %v1824
      %1826 = vmatmul.f32.gmra.mxu0 %v1427
      %v1827 = vpop.f32.mrf.mxu0
      %v1828 = vadd.f32 %v1282, %v1827
      %1829 = vmatmul.f32.gmra.mxu0 %v1430
      %v1830 = vpop.f32.mrf.mxu0
      %v1831 = vadd.f32 %v1282, %v1830
      %1832 = vmatmul.f32.gmra.mxu0 %v1433
      %v1833 = vpop.f32.mrf.mxu0
      %v1834 = vadd.f32 %v1282, %v1833
      %1835 = vmatmul.f32.gmra.mxu0 %v1436
      %v1836 = vpop.f32.mrf.mxu0
      %v1837 = vadd.f32 %v1282, %v1836
      %1838 = vmatmul.f32.gmra.mxu0 %v1439
      %v1839 = vpop.f32.mrf.mxu0
      %v1840 = vadd.f32 %v1282, %v1839
      %1841 = vmatmul.f32.gmra.mxu0 %v1442
      %v1842 = vpop.f32.mrf.mxu0
      %v1843 = vadd.f32 %v1282, %v1842
      %1844 = vmatmul.f32.gmra.mxu0 %v1445
      %v1845 = vpop.f32.mrf.mxu0
      %v1846 = vadd.f32 %v1282, %v1845
      %1847 = vmatmul.f32.gmra.mxu0 %v1448
      %v1848 = vpop.f32.mrf.mxu0
      %v1849 = vadd.f32 %v1282, %v1848
      %1850 = vmatmul.f32.gmra.mxu0 %v1451
      %v1851 = vpop.f32.mrf.mxu0
      %v1852 = vadd.f32 %v1282, %v1851
      %1853 = vmatmul.f32.gmra.mxu0 %v1454
      %v1854 = vpop.f32.mrf.mxu0
      %v1855 = vadd.f32 %v1282, %v1854
      %1856 = vmatmul.f32.gmra.mxu0 %v1457
      %v1857 = vpop.f32.mrf.mxu0
      %v1858 = vadd.f32 %v1282, %v1857
      %1859 = vmatmul.f32.gmra.mxu0 %v1460
      %v1860 = vpop.f32.mrf.mxu0
      %v1861 = vadd.f32 %v1282, %v1860
      %1862 = vmatmul.f32.gmra.mxu0 %v1463
      %v1863 = vpop.f32.mrf.mxu0
      %v1864 = vadd.f32 %v1282, %v1863
      %1865 = vmatmul.f32.gmra.mxu0 %v1466
      %v1866 = vpop.f32.mrf.mxu0
      %v1867 = vadd.f32 %v1282, %v1866
      %1868 = vmatmul.f32.gmra.mxu0 %v1469
      %v1869 = vpop.f32.mrf.mxu0
      %v1870 = vadd.f32 %v1282, %v1869
      %1871 = vmatmul.f32.gmra.mxu0 %v1472
      %v1872 = vpop.f32.mrf.mxu0
      %v1873 = vadd.f32 %v1282, %v1872
      %1874 = vmatmul.f32.gmra.mxu0 %v1475
      %v1875 = vpop.f32.mrf.mxu0
      %v1876 = vadd.f32 %v1282, %v1875
      %1877 = vmatmul.f32.gmra.mxu0 %v1478
      %v1878 = vpop.f32.mrf.mxu0
      %v1879 = vadd.f32 %v1282, %v1878
      %1880 = vmatmul.f32.gmra.mxu0 %v1481
      %v1881 = vpop.f32.mrf.mxu0
      %v1882 = vadd.f32 %v1282, %v1881
      %1883 = vmatmul.f32.gmra.mxu0 %v1484
      %v1884 = vpop.f32.mrf.mxu0
      %v1885 = vadd.f32 %v1282, %v1884
      %1886 = vmatmul.f32.gmra.mxu0 %v1487
      %v1887 = vpop.f32.mrf.mxu0
      %v1888 = vadd.f32 %v1282, %v1887
      %1889 = vmatmul.f32.gmra.mxu0 %v1490
      %v1890 = vpop.f32.mrf.mxu0
      %v1891 = vadd.f32 %v1282, %v1890
      %1892 = vmatmul.f32.gmra.mxu0 %v1493
      %v1893 = vpop.f32.mrf.mxu0
      %v1894 = vadd.f32 %v1282, %v1893
      %1895 = vmatmul.f32.gmra.mxu0 %v1496
      %v1896 = vpop.f32.mrf.mxu0
      %v1897 = vadd.f32 %v1282, %v1896
      %1898 = vmatmul.f32.gmra.mxu0 %v1499
      %v1899 = vpop.f32.mrf.mxu0
      %v1900 = vadd.f32 %v1282, %v1899
      %1901 = vmatmul.f32.gmra.mxu0 %v1502
      %v1902 = vpop.f32.mrf.mxu0
      %v1903 = vadd.f32 %v1282, %v1902
      %1904 = vmatmul.f32.gmra.mxu0 %v1505
      %v1905 = vpop.f32.mrf.mxu0
      %v1906 = vadd.f32 %v1282, %v1905
      %1907 = vmatmul.f32.gmra.mxu0 %v1508
      %v1908 = vpop.f32.mrf.mxu0
      %v1909 = vadd.f32 %v1282, %v1908
      %1910 = vmatmul.f32.gmra.mxu0 %v1511
      %v1911 = vpop.f32.mrf.mxu0
      %v1912 = vadd.f32 %v1282, %v1911
      %1913 = vmatmul.f32.gmra.mxu0 %v1514
      %v1914 = vpop.f32.mrf.mxu0
      %v1915 = vadd.f32 %v1282, %v1914
      %1916 = vmatmul.f32.gmra.mxu0 %v1517
      %v1917 = vpop.f32.mrf.mxu0
      %v1918 = vadd.f32 %v1282, %v1917
      %1919 = vmatmul.f32.gmra.mxu0 %v1520
      %v1920 = vpop.f32.mrf.mxu0
      %v1921 = vadd.f32 %v1282, %v1920
      %1922 = vmatmul.f32.gmra.mxu0 %v1523
      %v1923 = vpop.f32.mrf.mxu0
      %v1924 = vadd.f32 %v1282, %v1923
      %1925 = vmatmul.f32.gmra.mxu0 %v1526
      %v1926 = vpop.f32.mrf.mxu0
      %v1927 = vadd.f32 %v1282, %v1926
      %1928 = vmatmul.f32.gmra.mxu0 %v1529
      %v1929 = vpop.f32.mrf.mxu0
      %v1930 = vadd.f32 %v1282, %v1929
      %1931 = vmatmul.f32.gmra.mxu0 %v1532
      %v1932 = vpop.f32.mrf.mxu0
      %v1933 = vadd.f32 %v1282, %v1932
      %1934 = vmatmul.f32.gmra.mxu0 %v1535
      %v1935 = vpop.f32.mrf.mxu0
      %v1936 = vadd.f32 %v1282, %v1935
      %1937 = vmatmul.f32.gmra.mxu0 %v1538
      %v1938 = vpop.f32.mrf.mxu0
      %v1939 = vadd.f32 %v1282, %v1938
      %1940 = vmatmul.f32.gmra.mxu0 %v1541
      %v1941 = vpop.f32.mrf.mxu0
      %v1942 = vadd.f32 %v1282, %v1941
      %1943 = vmatmul.f32.gmra.mxu0 %v1544
      %v1944 = vpop.f32.mrf.mxu0
      %v1945 = vadd.f32 %v1282, %v1944
      %1946 = vmatmul.f32.gmra.mxu0 %v1547
      %v1947 = vpop.f32.mrf.mxu0
      %v1948 = vadd.f32 %v1282, %v1947
      %1949 = vmatmul.f32.gmra.mxu0 %v1550
      %v1950 = vpop.f32.mrf.mxu0
      %v1951 = vadd.f32 %v1282, %v1950
      %1952 = vmatmul.f32.gmra.mxu0 %v1553
      %v1953 = vpop.f32.mrf.mxu0
      %v1954 = vadd.f32 %v1282, %v1953
      %1955 = vmatmul.f32.gmra.mxu0 %v1556
      %v1956 = vpop.f32.mrf.mxu0
      %v1957 = vadd.f32 %v1282, %v1956
      %1958 = vmatmul.f32.gmra.mxu0 %v1559
      %v1959 = vpop.f32.mrf.mxu0
      %v1960 = vadd.f32 %v1282, %v1959
      %1961 = vmatmul.f32.gmra.mxu0 %v1562
      %v1962 = vpop.f32.mrf.mxu0
      %v1963 = vadd.f32 %v1282, %v1962
      %1964 = vmatmul.f32.gmra.mxu0 %v1565
      %v1965 = vpop.f32.mrf.mxu0
      %v1966 = vadd.f32 %v1282, %v1965
      %1967 = vmatmul.f32.gmra.mxu0 %v1568
      %v1968 = vpop.f32.mrf.mxu0
      %v1969 = vadd.f32 %v1282, %v1968
      %1970 = vmatmul.f32.gmra.mxu0 %v1571
      %v1971 = vpop.f32.mrf.mxu0
      %v1972 = vadd.f32 %v1282, %v1971
      %1973 = vmatmul.f32.gmra.mxu0 %v1574
      %v1974 = vpop.f32.mrf.mxu0
      %v1975 = vadd.f32 %v1282, %v1974
      %1976 = vmatmul.f32.gmra.mxu0 %v1577
      %v1977 = vpop.f32.mrf.mxu0
      %v1978 = vadd.f32 %v1282, %v1977
      %1979 = vmatmul.f32.gmra.mxu0 %v1580
      %v1980 = vpop.f32.mrf.mxu0
      %v1981 = vadd.f32 %v1282, %v1980
      %1982 = vmatmul.f32.gmra.mxu0 %v1583
      %v1983 = vpop.f32.mrf.mxu0
      %v1984 = vadd.f32 %v1282, %v1983
      %1985 = vmatmul.f32.gmra.mxu0 %v1586
      %v1986 = vpop.f32.mrf.mxu0
      %v1987 = vadd.f32 %v1282, %v1986
      %1988 = vmatmul.f32.gmra.mxu0 %v1589
      %v1989 = vpop.f32.mrf.mxu0
      %v1990 = vadd.f32 %v1282, %v1989
      %1991 = vmatmul.f32.gmra.mxu0 %v1592
      %v1992 = vpop.f32.mrf.mxu0
      %v1993 = vadd.f32 %v1282, %v1992
      %1994 = vmatmul.f32.gmra.mxu0 %v1595
      %v1995 = vpop.f32.mrf.mxu0
      %v1996 = vadd.f32 %v1282, %v1995
      %1997 = vmatmul.f32.gmra.mxu0 %v1598
      %v1998 = vpop.f32.mrf.mxu0
      %v1999 = vadd.f32 %v1282, %v1998
      %2000 = vmatmul.f32.gmra.mxu0 %v1601
      %v2001 = vpop.f32.mrf.mxu0
      %v2002 = vadd.f32 %v1282, %v2001
      %2003 = vmatmul.f32.gmra.mxu0 %v1604
      %v2004 = vpop.f32.mrf.mxu0
      %v2005 = vadd.f32 %v1282, %v2004
      %2006 = vmatmul.f32.gmra.mxu0 %v1607
      %v2007 = vpop.f32.mrf.mxu0
      %v2008 = vadd.f32 %v1282, %v2007
      %2009 = vmatmul.f32.gmra.mxu0 %v1610
      %v2010 = vpop.f32.mrf.mxu0
      %v2011 = vadd.f32 %v1282, %v2010
      %2012 = vmatmul.f32.gmra.mxu0 %v1613
      %v2013 = vpop.f32.mrf.mxu0
      %v2014 = vadd.f32 %v1282, %v2013
      %2015 = vmatmul.f32.gmra.mxu0 %v1616
      %v2016 = vpop.f32.mrf.mxu0
      %v2017 = vadd.f32 %v1282, %v2016
      %2018 = vmatmul.f32.gmra.mxu0 %v1619
      %v2019 = vpop.f32.mrf.mxu0
      %v2020 = vadd.f32 %v1282, %v2019
      %2021 = vmatmul.f32.gmra.mxu0 %v1622
      %v2022 = vpop.f32.mrf.mxu0
      %v2023 = vadd.f32 %v1282, %v2022
      %2024 = vmatmul.f32.gmra.mxu0 %v1625
      %v2025 = vpop.f32.mrf.mxu0
      %v2026 = vadd.f32 %v1282, %v2025
      %2027 = vmatmul.f32.gmra.mxu0 %v1628
      %v2028 = vpop.f32.mrf.mxu0
      %v2029 = vadd.f32 %v1282, %v2028
      %2030 = vmatmul.f32.gmra.mxu0 %v1631
      %v2031 = vpop.f32.mrf.mxu0
      %v2032 = vadd.f32 %v1282, %v2031
      %2033 = vmatmul.f32.gmra.mxu0 %v1634
      %v2034 = vpop.f32.mrf.mxu0
      %v2035 = vadd.f32 %v1282, %v2034
      %2036 = vmatmul.f32.gmra.mxu0 %v1637
      %v2037 = vpop.f32.mrf.mxu0
      %v2038 = vadd.f32 %v1282, %v2037
      %2039 = vmatmul.f32.gmra.mxu0 %v1640
      %v2040 = vpop.f32.mrf.mxu0
      %v2041 = vadd.f32 %v1282, %v2040
      %2042 = vmatmul.f32.gmra.mxu0 %v1643
      %v2043 = vpop.f32.mrf.mxu0
      %v2044 = vadd.f32 %v1282, %v2043
      %2045 = vmatmul.f32.gmra.mxu0 %v1646
      %v2046 = vpop.f32.mrf.mxu0
      %v2047 = vadd.f32 %v1282, %v2046
      %2048 = vmatmul.f32.gmra.mxu0 %v1649
      %v2049 = vpop.f32.mrf.mxu0
      %v2050 = vadd.f32 %v1282, %v2049
      %2051 = vmatmul.f32.gmra.mxu0 %v1652
      %v2052 = vpop.f32.mrf.mxu0
      %v2053 = vadd.f32 %v1282, %v2052
      %2054 = vmatmul.f32.gmra.mxu0 %v1655
      %v2055 = vpop.f32.mrf.mxu0
      %v2056 = vadd.f32 %v1282, %v2055
      %2057 = vmatmul.f32.gmra.mxu0 %v1658
      %v2058 = vpop.f32.mrf.mxu0
      %v2059 = vadd.f32 %v1282, %v2058
      %2060 = vmatmul.f32.gmra.mxu0 %v1661
      %v2061 = vpop.f32.mrf.mxu0
      %v2062 = vadd.f32 %v1282, %v2061
      %2063 = vmatmul.f32.gmra.mxu0 %v1664
      %v2064 = vpop.f32.mrf.mxu0
      %v2065 = vadd.f32 %v1282, %v2064
      %2066 = vmatmul.f32.gmra.mxu0 %v1667
      %v2067 = vpop.f32.mrf.mxu0
      %v2068 = vadd.f32 %v1282, %v2067
      %2069 = vdwg.mxu0
      %vm2070 = vcmask 31744
      %2071 = vst.msk [vmem:[%s226] sm:$0xff] %vm2070, %v1687
      %2072 = vst.msk [vmem:[%s226 + $0x8] sm:$0xff] %vm2070, %v1690
      %2073 = vst.msk [vmem:[%s226 + $0x10] sm:$0xff] %vm2070, %v1693
      %2074 = vst.msk [vmem:[%s226 + $0x18] sm:$0xff] %vm2070, %v1696
      %2075 = vst.msk [vmem:[%s226 + $0x20] sm:$0xff] %vm2070, %v1699
      %2076 = vst.msk [vmem:[%s226 + $0x28] sm:$0xff] %vm2070, %v1702
      %2077 = vst.msk [vmem:[%s226 + $0x30] sm:$0xff] %vm2070, %v1705
      %2078 = vst.msk [vmem:[%s226 + $0x38] sm:$0xff] %vm2070, %v1708
      %2079 = vst.msk [vmem:[%s226 + $0x40] sm:$0xff] %vm2070, %v1711
      %2080 = vst.msk [vmem:[%s226 + $0x48] sm:$0xff] %vm2070, %v1714
      %2081 = vst.msk [vmem:[%s226 + $0x50] sm:$0xff] %vm2070, %v1717
      %2082 = vst.msk [vmem:[%s226 + $0x58] sm:$0xff] %vm2070, %v1720
      %2083 = vst.msk [vmem:[%s226 + $0x60] sm:$0xff] %vm2070, %v1723
      %2084 = vst.msk [vmem:[%s226 + $0x68] sm:$0xff] %vm2070, %v1726
      %2085 = vst.msk [vmem:[%s226 + $0x70] sm:$0xff] %vm2070, %v1729
      %2086 = vst.msk [vmem:[%s226 + $0x78] sm:$0xff] %vm2070, %v1732
      %2087 = vst.msk [vmem:[%s226 + $0x80] sm:$0xff] %vm2070, %v1735
      %2088 = vst.msk [vmem:[%s226 + $0x88] sm:$0xff] %vm2070, %v1738
      %2089 = vst.msk [vmem:[%s226 + $0x90] sm:$0xff] %vm2070, %v1741
      %2090 = vst.msk [vmem:[%s226 + $0x98] sm:$0xff] %vm2070, %v1744
      %2091 = vst.msk [vmem:[%s226 + $0xa0] sm:$0xff] %vm2070, %v1747
      %2092 = vst.msk [vmem:[%s226 + $0xa8] sm:$0xff] %vm2070, %v1750
      %2093 = vst.msk [vmem:[%s226 + $0xb0] sm:$0xff] %vm2070, %v1753
      %2094 = vst.msk [vmem:[%s226 + $0xb8] sm:$0xff] %vm2070, %v1756
      %2095 = vst.msk [vmem:[%s226 + $0xc0] sm:$0xff] %vm2070, %v1759
      %2096 = vst.msk [vmem:[%s226 + $0xc8] sm:$0xff] %vm2070, %v1762
      %2097 = vst.msk [vmem:[%s226 + $0xd0] sm:$0xff] %vm2070, %v1765
      %2098 = vst.msk [vmem:[%s226 + $0xd8] sm:$0xff] %vm2070, %v1768
      %2099 = vst.msk [vmem:[%s226 + $0xe0] sm:$0xff] %vm2070, %v1771
      %2100 = vst.msk [vmem:[%s226 + $0xe8] sm:$0xff] %vm2070, %v1774
      %2101 = vst.msk [vmem:[%s226 + $0xf0] sm:$0xff] %vm2070, %v1777
      %2102 = vst.msk [vmem:[%s226 + $0xf8] sm:$0xff] %vm2070, %v1780
      %2103 = vst.msk [vmem:[%s226 + $0x100] sm:$0xff] %vm2070, %v1783
      %2104 = vst.msk [vmem:[%s226 + $0x108] sm:$0xff] %vm2070, %v1786
      %2105 = vst.msk [vmem:[%s226 + $0x110] sm:$0xff] %vm2070, %v1789
      %2106 = vst.msk [vmem:[%s226 + $0x118] sm:$0xff] %vm2070, %v1792
      %2107 = vst.msk [vmem:[%s226 + $0x120] sm:$0xff] %vm2070, %v1795
      %2108 = vst.msk [vmem:[%s226 + $0x128] sm:$0xff] %vm2070, %v1798
      %2109 = vst.msk [vmem:[%s226 + $0x130] sm:$0xff] %vm2070, %v1801
      %2110 = vst.msk [vmem:[%s226 + $0x138] sm:$0xff] %vm2070, %v1804
      %2111 = vst.msk [vmem:[%s226 + $0x140] sm:$0xff] %vm2070, %v1807
      %2112 = vst.msk [vmem:[%s226 + $0x148] sm:$0xff] %vm2070, %v1810
      %2113 = vst.msk [vmem:[%s226 + $0x150] sm:$0xff] %vm2070, %v1813
      %2114 = vst.msk [vmem:[%s226 + $0x158] sm:$0xff] %vm2070, %v1816
      %2115 = vst.msk [vmem:[%s226 + $0x160] sm:$0xff] %vm2070, %v1819
      %2116 = vst.msk [vmem:[%s226 + $0x168] sm:$0xff] %vm2070, %v1822
      %2117 = vst.msk [vmem:[%s226 + $0x170] sm:$0xff] %vm2070, %v1825
      %2118 = vst.msk [vmem:[%s226 + $0x178] sm:$0xff] %vm2070, %v1828
      %2119 = vst.msk [vmem:[%s226 + $0x180] sm:$0xff] %vm2070, %v1831
      %2120 = vst.msk [vmem:[%s226 + $0x188] sm:$0xff] %vm2070, %v1834
      %2121 = vst.msk [vmem:[%s226 + $0x190] sm:$0xff] %vm2070, %v1837
      %2122 = vst.msk [vmem:[%s226 + $0x198] sm:$0xff] %vm2070, %v1840
      %2123 = vst.msk [vmem:[%s226 + $0x1a0] sm:$0xff] %vm2070, %v1843
      %2124 = vst.msk [vmem:[%s226 + $0x1a8] sm:$0xff] %vm2070, %v1846
      %2125 = vst.msk [vmem:[%s226 + $0x1b0] sm:$0xff] %vm2070, %v1849
      %2126 = vst.msk [vmem:[%s226 + $0x1b8] sm:$0xff] %vm2070, %v1852
      %2127 = vst.msk [vmem:[%s226 + $0x1c0] sm:$0xff] %vm2070, %v1855
      %2128 = vst.msk [vmem:[%s226 + $0x1c8] sm:$0xff] %vm2070, %v1858
      %2129 = vst.msk [vmem:[%s226 + $0x1d0] sm:$0xff] %vm2070, %v1861
      %2130 = vst.msk [vmem:[%s226 + $0x1d8] sm:$0xff] %vm2070, %v1864
      %2131 = vst.msk [vmem:[%s226 + $0x1e0] sm:$0xff] %vm2070, %v1867
      %2132 = vst.msk [vmem:[%s226 + $0x1e8] sm:$0xff] %vm2070, %v1870
      %2133 = vst.msk [vmem:[%s226 + $0x1f0] sm:$0xff] %vm2070, %v1873
      %2134 = vst.msk [vmem:[%s226 + $0x1f8] sm:$0xff] %vm2070, %v1876
      %2135 = vst.msk [vmem:[%s226 + $0x200] sm:$0xff] %vm2070, %v1879
      %2136 = vst.msk [vmem:[%s226 + $0x208] sm:$0xff] %vm2070, %v1882
      %2137 = vst.msk [vmem:[%s226 + $0x210] sm:$0xff] %vm2070, %v1885
      %2138 = vst.msk [vmem:[%s226 + $0x218] sm:$0xff] %vm2070, %v1888
      %2139 = vst.msk [vmem:[%s226 + $0x220] sm:$0xff] %vm2070, %v1891
      %2140 = vst.msk [vmem:[%s226 + $0x228] sm:$0xff] %vm2070, %v1894
      %2141 = vst.msk [vmem:[%s226 + $0x230] sm:$0xff] %vm2070, %v1897
      %2142 = vst.msk [vmem:[%s226 + $0x238] sm:$0xff] %vm2070, %v1900
      %2143 = vst.msk [vmem:[%s226 + $0x240] sm:$0xff] %vm2070, %v1903
      %2144 = vst.msk [vmem:[%s226 + $0x248] sm:$0xff] %vm2070, %v1906
      %2145 = vst.msk [vmem:[%s226 + $0x250] sm:$0xff] %vm2070, %v1909
      %2146 = vst.msk [vmem:[%s226 + $0x258] sm:$0xff] %vm2070, %v1912
      %2147 = vst.msk [vmem:[%s226 + $0x260] sm:$0xff] %vm2070, %v1915
      %2148 = vst.msk [vmem:[%s226 + $0x268] sm:$0xff] %vm2070, %v1918
      %2149 = vst.msk [vmem:[%s226 + $0x270] sm:$0xff] %vm2070, %v1921
      %2150 = vst.msk [vmem:[%s226 + $0x278] sm:$0xff] %vm2070, %v1924
      %2151 = vst.msk [vmem:[%s226 + $0x280] sm:$0xff] %vm2070, %v1927
      %2152 = vst.msk [vmem:[%s226 + $0x288] sm:$0xff] %vm2070, %v1930
      %2153 = vst.msk [vmem:[%s226 + $0x290] sm:$0xff] %vm2070, %v1933
      %2154 = vst.msk [vmem:[%s226 + $0x298] sm:$0xff] %vm2070, %v1936
      %2155 = vst.msk [vmem:[%s226 + $0x2a0] sm:$0xff] %vm2070, %v1939
      %2156 = vst.msk [vmem:[%s226 + $0x2a8] sm:$0xff] %vm2070, %v1942
      %2157 = vst.msk [vmem:[%s226 + $0x2b0] sm:$0xff] %vm2070, %v1945
      %2158 = vst.msk [vmem:[%s226 + $0x2b8] sm:$0xff] %vm2070, %v1948
      %2159 = vst.msk [vmem:[%s226 + $0x2c0] sm:$0xff] %vm2070, %v1951
      %2160 = vst.msk [vmem:[%s226 + $0x2c8] sm:$0xff] %vm2070, %v1954
      %2161 = vst.msk [vmem:[%s226 + $0x2d0] sm:$0xff] %vm2070, %v1957
      %2162 = vst.msk [vmem:[%s226 + $0x2d8] sm:$0xff] %vm2070, %v1960
      %2163 = vst.msk [vmem:[%s226 + $0x2e0] sm:$0xff] %vm2070, %v1963
      %2164 = vst.msk [vmem:[%s226 + $0x2e8] sm:$0xff] %vm2070, %v1966
      %2165 = vst.msk [vmem:[%s226 + $0x2f0] sm:$0xff] %vm2070, %v1969
      %2166 = vst.msk [vmem:[%s226 + $0x2f8] sm:$0xff] %vm2070, %v1972
      %2167 = vst.msk [vmem:[%s226 + $0x300] sm:$0xff] %vm2070, %v1975
      %2168 = vst.msk [vmem:[%s226 + $0x308] sm:$0xff] %vm2070, %v1978
      %2169 = vst.msk [vmem:[%s226 + $0x310] sm:$0xff] %vm2070, %v1981
      %2170 = vst.msk [vmem:[%s226 + $0x318] sm:$0xff] %vm2070, %v1984
      %2171 = vst.msk [vmem:[%s226 + $0x320] sm:$0xff] %vm2070, %v1987
      %2172 = vst.msk [vmem:[%s226 + $0x328] sm:$0xff] %vm2070, %v1990
      %2173 = vst.msk [vmem:[%s226 + $0x330] sm:$0xff] %vm2070, %v1993
      %2174 = vst.msk [vmem:[%s226 + $0x338] sm:$0xff] %vm2070, %v1996
      %2175 = vst.msk [vmem:[%s226 + $0x340] sm:$0xff] %vm2070, %v1999
      %2176 = vst.msk [vmem:[%s226 + $0x348] sm:$0xff] %vm2070, %v2002
      %2177 = vst.msk [vmem:[%s226 + $0x350] sm:$0xff] %vm2070, %v2005
      %2178 = vst.msk [vmem:[%s226 + $0x358] sm:$0xff] %vm2070, %v2008
      %2179 = vst.msk [vmem:[%s226 + $0x360] sm:$0xff] %vm2070, %v2011
      %2180 = vst.msk [vmem:[%s226 + $0x368] sm:$0xff] %vm2070, %v2014
      %2181 = vst.msk [vmem:[%s226 + $0x370] sm:$0xff] %vm2070, %v2017
      %2182 = vst.msk [vmem:[%s226 + $0x378] sm:$0xff] %vm2070, %v2020
      %2183 = vst.msk [vmem:[%s226 + $0x380] sm:$0xff] %vm2070, %v2023
      %2184 = vst.msk [vmem:[%s226 + $0x388] sm:$0xff] %vm2070, %v2026
      %2185 = vst.msk [vmem:[%s226 + $0x390] sm:$0xff] %vm2070, %v2029
      %2186 = vst.msk [vmem:[%s226 + $0x398] sm:$0xff] %vm2070, %v2032
      %2187 = vst.msk [vmem:[%s226 + $0x3a0] sm:$0xff] %vm2070, %v2035
      %2188 = vst.msk [vmem:[%s226 + $0x3a8] sm:$0xff] %vm2070, %v2038
      %2189 = vst.msk [vmem:[%s226 + $0x3b0] sm:$0xff] %vm2070, %v2041
      %2190 = vst.msk [vmem:[%s226 + $0x3b8] sm:$0xff] %vm2070, %v2044
      %2191 = vst.msk [vmem:[%s226 + $0x3c0] sm:$0xff] %vm2070, %v2047
      %2192 = vst.msk [vmem:[%s226 + $0x3c8] sm:$0xff] %vm2070, %v2050
      %2193 = vst.msk [vmem:[%s226 + $0x3d0] sm:$0xff] %vm2070, %v2053
      %2194 = vst.msk [vmem:[%s226 + $0x3d8] sm:$0xff] %vm2070, %v2056
      %2195 = vst.msk [vmem:[%s226 + $0x3e0] sm:$0xff] %vm2070, %v2059
      %2196 = vst.msk [vmem:[%s226 + $0x3e8] sm:$0xff] %vm2070, %v2062
      %2197 = vst.msk [vmem:[%s226 + $0x3f0] sm:$0xff] %vm2070, %v2065
      %2198 = vst.msk [vmem:[%s226 + $0x3f8] sm:$0xff] %vm2070, %v2068
      %s2199 = smul.u32 128, %s16
      %p2200 = scmp.lt.s32.totalorder %s2199, 255
      %s2201 = scalar_select %p2200, %s2199, 255
      %s2202 = smul.addr %s2201, 8
      %s2203 = scalar_lea.vmem %s5, %s2202
      // Predicated region
      $region41: #{tpu_custom_call.1} parent=39 // pred_check
        %p2204 = pneg %p144
      $region42: #{tpu_custom_call.1} parent=39 // pred_check_branch
        %2206 = sbr.rel (%p2204) target = $region44
      $region43: #{tpu_custom_call.1} parent=39 // pred_region
        %s2207 = smul.u32 128, %s16
      $region44: #{tpu_custom_call.1} parent=39 // pred_fallthru
        _
    $region40: #{tpu_custom_call.1} parent=5 // pred_fallthru
      _
    %p2208 = scmp.le.s32.totalorder 2, %s11
    // Predicated region
    $region45: #{tpu_custom_call.1} parent=5 // pred_check
      %p2209 = pneg %p2208
    $region46: #{tpu_custom_call.1} parent=5 // pred_check_branch
      %2211 = sbr.rel (%p2209) target = $region48
    $region47: #{tpu_custom_call.1} parent=5 // pred_region
      %s2212 = ssub.s32 %s11, 2
      // Predicated region
      $region49: #{tpu_custom_call.1} parent=47 // pred_check
        %p2213 = pneg %p150
      $region50: #{tpu_custom_call.1} parent=47 // pred_check_branch
        %2215 = sbr.rel (%p2213) target = $region52
      $region51: #{tpu_custom_call.1} parent=47 // pred_region
        %s2216 = smul.u32 128, %s17
        %p2217 = scmp.lt.s32.totalorder %s2216, 255
        %s2218 = scalar_select %p2217, %s2216, 255
        %s2219 = smul.addr %s2218, 8
        %s2220 = scalar_lea.vmem %s5, %s2219
      $region52: #{tpu_custom_call.1} parent=47 // pred_fallthru
        _
    $region48: #{tpu_custom_call.1} parent=5 // pred_fallthru
      _
  $region6: #{tpu_custom_call.1} parent=0 // loop_footer
    %s15 = sadd.s32 1, %s11
  $region7: #{tpu_custom_call.1} parent=0 // loop_footer_branch
    %10 = sbr.rel target = $region3
  $region8: #{tpu_custom_call.1} parent=0 // loop_exit
    _

</llo_original>
